<compile_context>
chip_gen: v7x
topology: tpu7x:2x2x1
jax: 0.10.0
libtpu: 0.0.40
codegen_flags: <defaults>
</compile_context>

<pallas_src>
import functools
import math

import jax
import jax.numpy as jnp
from jax import lax
from jax.experimental import pallas as pl
from jax.experimental.pallas import tpu as pltpu


# ---------------------------------------------------------------------------
# Tiling helpers
# ---------------------------------------------------------------------------

def _vmem_budget_bytes():
    """~75% of per-core VMEM (leaves headroom for compiler scratch / double buffers)."""
    try:
        cap = int(pltpu.get_tpu_info().vmem_capacity_bytes)
    except Exception:
        cap = 64 * 1024 * 1024          # conservative fallback: v7x per-core VMEM
    return cap * 3 // 4


def _vmem_bytes_estimate(N, C, Cq, tq, attn_itemsize):
    """Rough per-step footprint: double-buffered pipeline blocks + on-chip temporaries."""
    f32 = 4
    blocks = (2 * C * N * f32                       # x, full image (block reused across t)
              + 2 * C * tq * f32                    # x, query tile
              + 2 * C * tq * f32                    # output tile
              + 2 * tq * N * max(attn_itemsize, 1)) # attention tile (if emitted)
    temps = ((C + Cq) * N * (f32 + 2)               # fused V|K activations (f32 + bf16 copy)
             + 2 * tq * N * f32                     # energy + probabilities (f32)
             + tq * N * 2)                          # bf16 probabilities for attn @ V
    return blocks + temps


def _pick_tq(N, C, Cq, attn_itemsize, vmem_budget):
    """Largest 128-multiple query-tile size dividing N that fits the VMEM budget."""
    divisors = [d for d in (1024, 512, 256, 128) if d <= N and N % d == 0]
    if not divisors:
        return N                     # small / non-128-multiple N: one tile per image
    for d in divisors:
        if _vmem_bytes_estimate(N, C, Cq, d, attn_itemsize) <= vmem_budget:
            return d
    return divisors[-1]


# ---------------------------------------------------------------------------
# Kernel
# ---------------------------------------------------------------------------

def _self_attention_kernel(C, Cq, compute_dtype,
                           x_full_ref,    # (1, C, N)   whole image, this batch element
                           x_tile_ref,    # (1, C, TQ)  query-row tile of the same image
                           wq_ref,        # (Cq, C)
                           bq_ref,        # (Cq, 1)
                           wvk_ref,       # (C+Cq, C)   [Wv ; Wk] fused
                           bvk_ref,       # (C+Cq, 1)   [bv ; bk] fused
                           gamma_ref,     # (1, 1)      SMEM scalar
                           out_ref,       # (1, C, TQ)
                           attn_ref=None  # (1, TQ, N)  optional attention writeback
                           ):
    cd = compute_dtype

    x_full = x_full_ref[0]                 # (C, N)  f32
    x_tile = x_tile_ref[0]                 # (C, TQ) f32

    # Fused value|key projection for the whole image; output is lane-dense (N lanes).
    # Recomputed per query tile: cheap relative to the TQ*N attention work and keeps
    # both grid axes safely 'parallel' (no cross-iteration scratch).
    vk = jnp.dot(wvk_ref[...].astype(cd), x_full.astype(cd),
                 preferred_element_type=jnp.float32) + bvk_ref[...]     # (C+Cq, N) f32
    v_t = vk[:C, :]                        # (C,  N)
    k_t = vk[C:, :]                        # (Cq, N)

    # Query projection only for this tile's rows.
    q_t = jnp.dot(wq_ref[...].astype(cd), x_tile.astype(cd),
                  preferred_element_type=jnp.float32) + bq_ref[...]     # (Cq, TQ) f32

    # energy[i, j] = <q_i, k_j> : contract the channel axis directly, no transposes.
    energy = lax.dot_general(q_t.astype(cd), k_t.astype(cd),
                             dimension_numbers=(((0,), (0,)), ((), ())),
                             preferred_element_type=jnp.float32)        # (TQ, N) f32

    # Row softmax in f32 (full key dim is resident, so no online rescaling needed).
    m = jnp.max(energy, axis=-1, keepdims=True)
    e = jnp.exp(energy - m)
    p = e * pl.reciprocal(jnp.sum(e, axis=-1, keepdims=True), approx=True)  # (TQ, N) f32

    # out_t[c, i] = sum_j v_t[c, j] * p[i, j]
    out_t = lax.dot_general(v_t.astype(cd), p.astype(cd),
                            dimension_numbers=(((1,), (1,)), ((), ())),
                            preferred_element_type=jnp.float32)         # (C, TQ) f32

    gamma = gamma_ref[0, 0]
    out_ref[0] = (gamma * out_t + x_tile).astype(out_ref.dtype)
    if attn_ref is not None:
        attn_ref[0] = p.astype(attn_ref.dtype)


# ---------------------------------------------------------------------------
# Wrapper
# ---------------------------------------------------------------------------

def self_attention_pallas(x, params, *, compute_dtype=jnp.bfloat16,
                          attn_dtype=jnp.float32, return_attention=True, tq=None):
    """x: (B, C, W, H). Returns (out (B,C,W,H), attention (B,N,N)) like the PyTorch module.

    compute_dtype: dtype fed to the MXU matmuls (f32 accumulation); bf16 recommended on
                   v6e/v7x, f32 for bit-closer numerics.
    attn_dtype:    dtype of the (B, N, N) attention writeback (bf16 halves HBM traffic).
    return_attention=False skips the N^2 writeback entirely and returns only `out`.
    """
    B, C, W, H = x.shape
    N = W * H
    Cq = params["wq"].shape[0]

    x_flat = x.reshape(B, C, N).astype(jnp.float32)                 # native PyTorch layout

    # Fused [value ; key] projection parameters: one weight DMA, one lane-dense matmul.
    w_vk = jnp.concatenate([params["wv"], params["wk"]], axis=0).astype(jnp.float32)  # (C+Cq, C)
    b_vk = jnp.concatenate([params["bv"], params["bk"]], axis=0).reshape(C + Cq, 1).astype(jnp.float32)
    w_q = params["wq"].astype(jnp.float32)                           # (Cq, C)
    b_q = params["bq"].reshape(Cq, 1).astype(jnp.float32)
    gamma = params["gamma"].reshape(1, 1).astype(jnp.float32)        # -> SMEM scalar

    attn_itemsize = jnp.dtype(attn_dtype).itemsize if return_attention else 0
    vmem_budget = _vmem_budget_bytes()
    if tq is None:
        tq = _pick_tq(N, C, Cq, attn_itemsize, vmem_budget)
    if N % tq != 0 or not (tq == N or tq % 128 == 0):
        raise ValueError(f"tq={tq} must divide N={N} and be a multiple of 128 (or equal N)")
    num_t = N // tq
    grid = (B, num_t)

    kernel = functools.partial(_self_attention_kernel, C, Cq, compute_dtype)

    in_specs = [
        pl.BlockSpec((1, C, N),   lambda b, t: (b, 0, 0)),   # x, full image (reused across t)
        pl.BlockSpec((1, C, tq),  lambda b, t: (b, 0, t)),   # x, query tile
        pl.BlockSpec((Cq, C),     lambda b, t: (0, 0)),      # Wq
        pl.BlockSpec((Cq, 1),     lambda b, t: (0, 0)),      # bq
        pl.BlockSpec((C + Cq, C), lambda b, t: (0, 0)),      # [Wv ; Wk]
        pl.BlockSpec((C + Cq, 1), lambda b, t: (0, 0)),      # [bv ; bk]
        pl.BlockSpec(memory_space=pltpu.MemorySpace.SMEM),   # gamma scalar in SMEM
    ]
    out_shape = [jax.ShapeDtypeStruct((B, C, N), x_flat.dtype)]
    out_specs = [pl.BlockSpec((1, C, tq), lambda b, t: (b, 0, t))]
    if return_attention:
        out_shape.append(jax.ShapeDtypeStruct((B, N, N), attn_dtype))
        out_specs.append(pl.BlockSpec((1, tq, N), lambda b, t: (b, t, 0)))

    flops = int(B * num_t * (2 * (C + Cq) * C * N     # fused V|K projection (per tile)
                             + 2 * Cq * C * tq        # Q projection (tile only)
                             + 2 * tq * N * Cq        # energy
                             + 2 * tq * N * C))       # attn @ V
    bytes_accessed = int(4 * B * C * N * 3            # x (full + tiles) read, out written
                         + B * N * N * attn_itemsize  # attention writeback
                         + 4 * ((C + Cq) * (C + 1) + Cq * (C + 1) + 1))

    results = pl.pallas_call(
        kernel,
        out_shape=out_shape,
        grid_spec=pltpu.PrefetchScalarGridSpec(
            num_scalar_prefetch=0,
            grid=grid,
            in_specs=in_specs,
            out_specs=out_specs),
        compiler_params=pltpu.CompilerParams(
            dimension_semantics=("parallel", "parallel"),
            vmem_limit_bytes=vmem_budget),
        cost_estimate=pl.CostEstimate(
            flops=flops,
            transcendentals=int(B * N * N),
            bytes_accessed=bytes_accessed),
    )(x_flat, x_flat, w_q, b_q, w_vk, b_vk, gamma)

    out = results[0].reshape(B, C, W, H)
    if not return_attention:
        return out
    # PyTorch returns softmax(energy).permute(0, 2, 1); do the big transpose on HBM (XLA),
    # keeping the in-kernel stores lane-dense.
    attention = jnp.transpose(results[1], (0, 2, 1))
    return out, attention


# ---------------------------------------------------------------------------
# Parameters + pure-JAX reference (mirrors the PyTorch forward)
# ---------------------------------------------------------------------------

def init_params(key, in_dim):
    """PyTorch-shaped parameters: Conv2d(in, out, 1) weight stored as (out, in)."""
    Cq = in_dim // 8
    ks = jax.random.split(key, 6)
    s = 1.0 / math.sqrt(in_dim)
    return {
        "wq": jax.random.uniform(ks[0], (Cq, in_dim), jnp.float32, -s, s),
        "bq": jax.random.uniform(ks[1], (Cq,), jnp.float32, -s, s),
        "wk": jax.random.uniform(ks[2], (Cq, in_dim), jnp.float32, -s, s),
        "bk": jax.random.uniform(ks[3], (Cq,), jnp.float32, -s, s),
        "wv": jax.random.uniform(ks[4], (in_dim, in_dim), jnp.float32, -s, s),
        "bv": jax.random.uniform(ks[5], (in_dim,), jnp.float32, -s, s),
        # gamma is zero-initialized in PyTorch; use 0.5 so the attention path is exercised.
        "gamma": jnp.full((1,), 0.5, jnp.float32),
    }


def self_attention_ref(x, params):
    B, C, W, H = x.shape
    N = W * H
    xf = x.reshape(B, C, N).astype(jnp.float32)
    q = jnp.einsum("oc,bcn->bon", params["wq"], xf) + params["bq"][None, :, None]  # (B, Cq, N)
    k = jnp.einsum("oc,bcn->bon", params["wk"], xf) + params["bk"][None, :, None]
    v = jnp.einsum("oc,bcn->bon", params["wv"], xf) + params["bv"][None, :, None]  # (B, C, N)
    energy = jnp.einsum("bci,bcj->bij", q, k)                                      # (B, N, N)
    attn_rows = jax.nn.softmax(energy, axis=-1)
    attention = jnp.transpose(attn_rows, (0, 2, 1))
    out = jnp.einsum("bcn,bnm->bcm", v, attention).reshape(B, C, W, H)
    out = params["gamma"][0] * out + x
    return out, attention


if __name__ == "__main__":
    key = jax.random.PRNGKey(0)
    kx, kp = jax.random.split(key)

    B, C, W, H = 2, 32, 16, 16          # N = 256 -> two query tiles of 128; Cq = 4
    x = jax.random.normal(kx, (B, C, W, H), jnp.float32)
    params = init_params(kp, C)

    out_expected, attn_expected = self_attention_ref(x, params)

    # f32 MXU path: tight check against the pure-JAX reference.
    fwd_f32 = jax.jit(functools.partial(self_attention_pallas,
                                        compute_dtype=jnp.float32,
                                        attn_dtype=jnp.float32, tq=128))
    out32, attn32 = fwd_f32(x, params)
    jax.block_until_ready((out32, attn32))
    assert out32.shape == (B, C, W, H) and attn32.shape == (B, W * H, W * H)
    assert jnp.allclose(out32, out_expected, atol=5e-3, rtol=5e-3)
    assert jnp.allclose(attn32, attn_expected, atol=5e-3, rtol=5e-3)

    # bf16 MXU inputs + bf16 attention writeback (fast path on v6e/v7x): loose check.
    fwd_bf16 = jax.jit(functools.partial(self_attention_pallas,
                                         compute_dtype=jnp.bfloat16,
                                         attn_dtype=jnp.bfloat16, tq=128))
    out16, attn16 = fwd_bf16(x, params)
    jax.block_until_ready((out16, attn16))
    assert jnp.allclose(out16, out_expected, atol=2e-1, rtol=2e-1)
    assert jnp.allclose(attn16.astype(jnp.float32), attn_expected, atol=1e-1, rtol=1e-1)

    print("KERNEL_OK")
</pallas_src>

<mosaic_0001>
module attributes {stable_mosaic.version = 11 : i64} {
  func.func @_self_attention_kernel(%arg0: i32, %arg1: i32, %arg2: memref<1x32x256xf32, #tpu.memory_space<vmem>>, %arg3: memref<1x32x128xf32, #tpu.memory_space<vmem>>, %arg4: memref<4x32xf32, #tpu.memory_space<vmem>>, %arg5: memref<4x1xf32, #tpu.memory_space<vmem>>, %arg6: memref<36x32xf32, #tpu.memory_space<vmem>>, %arg7: memref<36x1xf32, #tpu.memory_space<vmem>>, %arg8: memref<1x1xf32, #tpu.memory_space<smem>>, %arg9: memref<1x32x128xf32, #tpu.memory_space<vmem>>, %arg10: memref<1x128x256xf32, #tpu.memory_space<vmem>>) attributes {dimension_semantics = [#tpu.dimension_semantics<parallel>, #tpu.dimension_semantics<parallel>], iteration_bounds = array<i64: 2, 2>, scalar_prefetch = 0 : i64, scratch_operands = 0 : i64, tpu.core_type = #tpu.core_type<tc>, window_params = [{transform_indices = @transform_0, window_bounds = array<i64: 1, 32, 256>}, {transform_indices = @transform_1, window_bounds = array<i64: 1, 32, 128>}, {pipeline_mode = #tpu.pipeline_mode<synchronous>, transform_indices = @transform_2, window_bounds = array<i64: 4, 32>}, {pipeline_mode = #tpu.pipeline_mode<synchronous>, transform_indices = @transform_3, window_bounds = array<i64: 4, 1>}, {pipeline_mode = #tpu.pipeline_mode<synchronous>, transform_indices = @transform_4, window_bounds = array<i64: 36, 32>}, {pipeline_mode = #tpu.pipeline_mode<synchronous>, transform_indices = @transform_5, window_bounds = array<i64: 36, 1>}, {transform_indices = @transform_6, window_bounds = array<i64: 1, 1>}, {transform_indices = @transform_7, window_bounds = array<i64: 1, 32, 128>}, {transform_indices = @transform_8, window_bounds = array<i64: 1, 128, 256>}]} {
    %c0 = arith.constant 0 : index
    %c0_0 = arith.constant 0 : index
    %c0_1 = arith.constant 0 : index
    %0 = vector.load %arg2[%c0, %c0_0, %c0_1] : memref<1x32x256xf32, #tpu.memory_space<vmem>>, vector<1x32x256xf32>
    %1 = vector.shape_cast %0 : vector<1x32x256xf32> to vector<32x256xf32>
    %c0_2 = arith.constant 0 : index
    %c0_3 = arith.constant 0 : index
    %c0_4 = arith.constant 0 : index
    %2 = vector.load %arg3[%c0_2, %c0_3, %c0_4] : memref<1x32x128xf32, #tpu.memory_space<vmem>>, vector<1x32x128xf32>
    %3 = vector.shape_cast %2 : vector<1x32x128xf32> to vector<32x128xf32>
    %c0_5 = arith.constant 0 : index
    %c0_6 = arith.constant 0 : index
    %4 = vector.load %arg6[%c0_5, %c0_6] : memref<36x32xf32, #tpu.memory_space<vmem>>, vector<36x32xf32>
    %cst = arith.constant dense<0.000000e+00> : vector<36x256xf32>
    %5 = tpu.matmul %4, %1, %cst {dimension_numbers = #tpu.dot_dimension_numbers<[1], [0], [0], [1], [0, 0, 1, 1], [], []>} : vector<36x32xf32>, vector<32x256xf32>, vector<36x256xf32> -> vector<36x256xf32>
    %c0_7 = arith.constant 0 : index
    %c0_8 = arith.constant 0 : index
    %6 = vector.load %arg7[%c0_7, %c0_8] : memref<36x1xf32, #tpu.memory_space<vmem>>, vector<36x1xf32>
    %7 = vector.broadcast %6 : vector<36x1xf32> to vector<36x256xf32>
    %8 = arith.addf %5, %7 : vector<36x256xf32>
    %9 = vector.extract_strided_slice %8 {offsets = [0, 0], sizes = [32, 256], strides = [1, 1]} : vector<36x256xf32> to vector<32x256xf32>
    %10 = vector.extract_strided_slice %8 {offsets = [32, 0], sizes = [4, 256], strides = [1, 1]} : vector<36x256xf32> to vector<4x256xf32>
    %c0_9 = arith.constant 0 : index
    %c0_10 = arith.constant 0 : index
    %11 = vector.load %arg4[%c0_9, %c0_10] : memref<4x32xf32, #tpu.memory_space<vmem>>, vector<4x32xf32>
    %cst_11 = arith.constant dense<0.000000e+00> : vector<4x128xf32>
    %12 = tpu.matmul %11, %3, %cst_11 {dimension_numbers = #tpu.dot_dimension_numbers<[1], [0], [0], [1], [0, 0, 1, 1], [], []>} : vector<4x32xf32>, vector<32x128xf32>, vector<4x128xf32> -> vector<4x128xf32>
    %c0_12 = arith.constant 0 : index
    %c0_13 = arith.constant 0 : index
    %13 = vector.load %arg5[%c0_12, %c0_13] : memref<4x1xf32, #tpu.memory_space<vmem>>, vector<4x1xf32>
    %14 = vector.broadcast %13 : vector<4x1xf32> to vector<4x128xf32>
    %15 = arith.addf %12, %14 : vector<4x128xf32>
    %cst_14 = arith.constant dense<0.000000e+00> : vector<128x256xf32>
    %16 = tpu.matmul %15, %10, %cst_14 {dimension_numbers = #tpu.dot_dimension_numbers<[0], [0], [1], [1], [0, 1, 1, 1], [], []>} : vector<4x128xf32>, vector<4x256xf32>, vector<128x256xf32> -> vector<128x256xf32>
    %cst_15 = arith.constant dense<0xFF800000> : vector<128xf32>
    %17 = vector.multi_reduction <maximumf>, %16, %cst_15 [1] : vector<128x256xf32> to vector<128xf32>
    %18 = vector.shape_cast %17 : vector<128xf32> to vector<128x1xf32>
    %19 = vector.broadcast %18 : vector<128x1xf32> to vector<128x256xf32>
    %20 = arith.subf %16, %19 : vector<128x256xf32>
    %21 = math.exp %20 : vector<128x256xf32>
    %cst_16 = arith.constant dense<0.000000e+00> : vector<128xf32>
    %22 = vector.multi_reduction <add>, %21, %cst_16 [1] : vector<128x256xf32> to vector<128xf32>
    %23 = vector.shape_cast %22 : vector<128xf32> to vector<128x1xf32>
    %24 = tpu.reciprocal %23 {approx = true} : vector<128x1xf32> -> vector<128x1xf32>
    %25 = vector.broadcast %24 : vector<128x1xf32> to vector<128x256xf32>
    %26 = arith.mulf %21, %25 : vector<128x256xf32>
    %cst_17 = arith.constant dense<0.000000e+00> : vector<32x128xf32>
    %27 = tpu.matmul %9, %26, %cst_17 {dimension_numbers = #tpu.dot_dimension_numbers<[1], [1], [0], [0], [0, 0, 1, 0], [], []>} : vector<32x256xf32>, vector<128x256xf32>, vector<32x128xf32> -> vector<32x128xf32>
    %c0_18 = arith.constant 0 : index
    %c0_19 = arith.constant 0 : index
    %28 = memref.load %arg8[%c0_18, %c0_19] : memref<1x1xf32, #tpu.memory_space<smem>>
    %29 = vector.broadcast %28 : f32 to vector<32x128xf32>
    %30 = arith.mulf %29, %27 : vector<32x128xf32>
    %31 = arith.addf %30, %3 : vector<32x128xf32>
    %c0_20 = arith.constant 0 : index
    %c0_21 = arith.constant 0 : index
    %c0_22 = arith.constant 0 : index
    %32 = vector.load %arg9[%c0_20, %c0_21, %c0_22] : memref<1x32x128xf32, #tpu.memory_space<vmem>>, vector<1x32x128xf32>
    %33 = vector.shape_cast %32 : vector<1x32x128xf32> to vector<32x128xf32>
    %34 = vector.shape_cast %31 : vector<32x128xf32> to vector<1x32x128xf32>
    tpu.vector_store %arg9[%c0_20, %c0_21, %c0_22], %34 {strides = array<i32>} : memref<1x32x128xf32, #tpu.memory_space<vmem>>, vector<1x32x128xf32>,
    %c0_23 = arith.constant 0 : index
    %c0_24 = arith.constant 0 : index
    %c0_25 = arith.constant 0 : index
    %35 = vector.load %arg10[%c0_23, %c0_24, %c0_25] : memref<1x128x256xf32, #tpu.memory_space<vmem>>, vector<1x128x256xf32>
    %36 = vector.shape_cast %35 : vector<1x128x256xf32> to vector<128x256xf32>
    %37 = vector.shape_cast %26 : vector<128x256xf32> to vector<1x128x256xf32>
    tpu.vector_store %arg10[%c0_23, %c0_24, %c0_25], %37 {strides = array<i32>} : memref<1x128x256xf32, #tpu.memory_space<vmem>>, vector<1x128x256xf32>,
    return
  }
  func.func @transform_0(%arg0: i32, %arg1: i32) -> (i32, i32, i32) {
    %c0_i32 = arith.constant 0 : i32
    %c0_i32_0 = arith.constant 0 : i32
    %c0_i32_1 = arith.constant 0 : i32
    return %arg0, %c0_i32, %c0_i32_0 : i32, i32, i32
  }
  func.func @transform_1(%arg0: i32, %arg1: i32) -> (i32, i32, i32) {
    %c0_i32 = arith.constant 0 : i32
    %c0_i32_0 = arith.constant 0 : i32
    return %arg0, %c0_i32, %arg1 : i32, i32, i32
  }
  func.func @transform_2(%arg0: i32, %arg1: i32) -> (i32, i32) {
    %c0_i32 = arith.constant 0 : i32
    %c0_i32_0 = arith.constant 0 : i32
    %c0_i32_1 = arith.constant 0 : i32
    return %c0_i32, %c0_i32_0 : i32, i32
  }
  func.func @transform_3(%arg0: i32, %arg1: i32) -> (i32, i32) {
    %c0_i32 = arith.constant 0 : i32
    %c0_i32_0 = arith.constant 0 : i32
    %c0_i32_1 = arith.constant 0 : i32
    return %c0_i32, %c0_i32_0 : i32, i32
  }
  func.func @transform_4(%arg0: i32, %arg1: i32) -> (i32, i32) {
    %c0_i32 = arith.constant 0 : i32
    %c0_i32_0 = arith.constant 0 : i32
    %c0_i32_1 = arith.constant 0 : i32
    return %c0_i32, %c0_i32_0 : i32, i32
  }
  func.func @transform_5(%arg0: i32, %arg1: i32) -> (i32, i32) {
    %c0_i32 = arith.constant 0 : i32
    %c0_i32_0 = arith.constant 0 : i32
    %c0_i32_1 = arith.constant 0 : i32
    return %c0_i32, %c0_i32_0 : i32, i32
  }
  func.func @transform_6(%arg0: i32, %arg1: i32) -> (i32, i32) {
    %c0_i32 = arith.constant 0 : i32
    %c0_i32_0 = arith.constant 0 : i32
    %c0_i32_1 = arith.constant 0 : i32
    return %c0_i32, %c0_i32_0 : i32, i32
  }
  func.func @transform_7(%arg0: i32, %arg1: i32) -> (i32, i32, i32) {
    %c0_i32 = arith.constant 0 : i32
    %c0_i32_0 = arith.constant 0 : i32
    return %arg0, %c0_i32, %arg1 : i32, i32, i32
  }
  func.func @transform_8(%arg0: i32, %arg1: i32) -> (i32, i32, i32) {
    %c0_i32 = arith.constant 0 : i32
    %c0_i32_0 = arith.constant 0 : i32
    return %arg0, %arg1, %c0_i32 : i32, i32, i32
  }
}

</mosaic_0001>

<llo_original>
// kernel: self_attention_pallas.1
$region0: #{self_attention_pallas.1}
  #allocation0 [shape = 'u32[]', space=smem, size = 0x4, offset = 0x4, fixed_abs, tag = 'smem constant byte address 0x4 - core index']
  #allocation1 [shape = 'u32[144,128]{1,0:T(1,128)}', space=vmem, size = 0x12000, scoped, tag = 'internal scratch']
  #allocation2 [shape = 'f32[1,1]{1,0:T(1,128)S(6)}', space=smem, size = 0x200, scoped, tag = 'scoped memory for self_attention_pallas.1']
  %s0 = inlined_call_operand.vmem [shape: f32[2,32,256], index: 0, kind: input, shape index: {}, may-alias: {0,1}]
  %s1 = inlined_call_operand.vmem [shape: f32[2,32,256], index: 1, kind: input, shape index: {}, may-alias: {0,1}]
  %s2 = inlined_call_operand.vmem [shape: f32[4,32], index: 2, kind: input, shape index: {}]
  %s3 = inlined_call_operand.vmem [shape: f32[4,1], index: 3, kind: input, shape index: {}]
  %s4 = inlined_call_operand.vmem [shape: f32[36,32], index: 4, kind: input, shape index: {}]
  %s5 = inlined_call_operand.vmem [shape: f32[36,1], index: 5, kind: input, shape index: {}]
  %s6 = inlined_call_operand.<no memory space> [shape: f32[1,1], index: 6, kind: input, shape index: {}]
  %s7 = inlined_call_operand.vmem [shape: f32[2,32,256], index: 7, kind: output, shape index: {0}]
  %s8 = inlined_call_operand.vmem [shape: f32[2,256,256], index: 8, kind: output, shape index: {1}]
  %9 = xla_tuple %s7, %s8
  %s10 = sld [smem:[#allocation0]]
  $region141: #{self_attention_pallas.1} parent=0
    _
  %s12 = ssub.s32 1, %s10
  %s13 = scalar_select 0, %s12, %s10
  %14 = sst [smem:[#allocation2]] %s6
  $region1: #{self_attention_pallas.1} parent=0
    #allocation3 [shape = 'u8[32768]{0}', space=vmem, size = 0x8000, scoped, tag = 'input window, operand 1']
    #allocation4 [shape = 'u8[32768]{0}', space=vmem, size = 0x8000, scoped, tag = 'output window, operand 0']
    loop: start=0, step=1, limit=6
    $region2: #{self_attention_pallas.1} parent=1 // loop_pre_header
      _
    $region3: #{self_attention_pallas.1} parent=1 // loop_header
      %s16 = sphi 0, %s20
      %p17 = scmp.ge.s32.totalorder %s16, 6
      %s23 = sphi 0, %s35
      %s24 = sphi 0, %s31
      %s25 = sphi 0, %s23
      %s26 = sphi 0, %s24
      %s27 = sphi 0, %s25
      %s28 = sphi 0, %s26
      %s38 = sphi 0, %s40
      %s41 = sphi 0, %s38
      %s42 = sphi 0, %s41
      %s58 = sphi 0, %s42
      %s66 = sphi 0, %s68
      %s69 = sphi 0, %s66
      %s70 = sphi 0, %s69
      %s86 = sphi 0, %s70
      %s90 = sphi 0, %s90
      %s92 = sphi 0, %s90
      %s93 = sphi 0, %s92
      %s107 = sphi 0, %s93
      %s111 = sphi 0, %s111
      %s113 = sphi 0, %s111
      %s114 = sphi 0, %s113
      %s128 = sphi 0, %s114
      %s132 = sphi 0, %s132
      %s134 = sphi 0, %s132
      %s135 = sphi 0, %s134
      %s149 = sphi 0, %s135
      %s153 = sphi 0, %s153
      %s155 = sphi 0, %s153
      %s156 = sphi 0, %s155
      %s170 = sphi 0, %s156
      %s174 = sphi 0, %s174
      %s176 = sphi 0, %s174
      %s177 = sphi 0, %s176
      %s191 = sphi 0, %s177
      %s199 = sphi 0, %s201
      %s202 = sphi 0, %s199
      %s203 = sphi 0, %s202
      %s219 = sphi 0, %s203
      %s227 = sphi 0, %s229
      %s230 = sphi 0, %s227
      %s231 = sphi 0, %s230
      %s247 = sphi 0, %s231
    $region4: #{self_attention_pallas.1} parent=1 // loop_header_branch
      %19 = sbr.rel (%p17) target = $region8
    $region5: #{self_attention_pallas.1} parent=1 // loop_body
      %s21 = ssub.s32 %s16, 1
      %s22 = ssub.s32 %s16, 2
      %s29 = sadd.s32 1, %s24
      %p30 = scmp.ge.s32.totalorder %s29, 2
      %s31 = scalar_select %p30, 0, %s29
      %s32 = sadd.s32 1, %s23
      %s33 = scalar_select %p30, %s32, %s23
      %p34 = scmp.ge.s32.totalorder %s33, 2
      %s35 = scalar_select %p34, 0, %s33
      %s36 = ssub.s32 %s23, %s35
      %p37 = scmp.eq.s32.totalorder %s36, 0
      %s39 = sadd.s32 %s38, 1
      %s40 = scalar_select %p37, %s38, %s39
      %p43 = pneg %p37
      %p44 = scmp.eq.s32.totalorder %s16, 3
      %p45 = por %p43, %p44
      %p46 = scmp.ne.s32.totalorder %s38, %s41
      %p47 = scmp.eq.s32.totalorder %s16, 0
      %p48 = por %p46, %p47
      %p49 = scmp.ne.s32.totalorder %s38, %s41
      %p50 = scmp.eq.s32.totalorder %s21, 3
      %p51 = por %p49, %p50
      %p52 = scmp.ne.s32.totalorder %s41, %s42
      %p53 = scmp.eq.s32.totalorder %s21, 0
      %p54 = por %p52, %p53
      %p55 = scmp.ne.s32.totalorder %s41, %s42
      %p56 = scmp.eq.s32.totalorder %s22, 3
      %p57 = por %p55, %p56
      %p59 = scmp.ne.s32.totalorder %s42, %s58
      %p60 = scmp.eq.s32.totalorder %s22, 0
      %p61 = por %p59, %p60
      %s62 = ssub.s32 %s23, %s35
      %s63 = ssub.s32 %s24, %s31
      %s64 = sor.u32 %s62, %s63
      %p65 = scmp.eq.s32.totalorder %s64, 0
      %s67 = sadd.s32 %s66, 1
      %s68 = scalar_select %p65, %s66, %s67
      %p71 = pneg %p65
      %p72 = scmp.eq.s32.totalorder %s16, 3
      %p73 = por %p71, %p72
      %p74 = scmp.ne.s32.totalorder %s66, %s69
      %p75 = scmp.eq.s32.totalorder %s16, 0
      %p76 = por %p74, %p75
      %p77 = scmp.ne.s32.totalorder %s66, %s69
      %p78 = scmp.eq.s32.totalorder %s21, 3
      %p79 = por %p77, %p78
      %p80 = scmp.ne.s32.totalorder %s69, %s70
      %p81 = scmp.eq.s32.totalorder %s21, 0
      %p82 = por %p80, %p81
      %p83 = scmp.ne.s32.totalorder %s69, %s70
      %p84 = scmp.eq.s32.totalorder %s22, 3
      %p85 = por %p83, %p84
      %p87 = scmp.ne.s32.totalorder %s70, %s86
      %p88 = scmp.eq.s32.totalorder %s22, 0
      %p89 = por %p87, %p88
      %s91 = sadd.s32 %s90, 1
      %p94 = scmp.eq.s32.totalorder %s16, 3
      %p95 = scmp.ne.s32.totalorder %s90, %s92
      %p96 = scmp.eq.s32.totalorder %s16, 0
      %p97 = por %p95, %p96
      %p98 = scmp.ne.s32.totalorder %s90, %s92
      %p99 = scmp.eq.s32.totalorder %s21, 3
      %p100 = por %p98, %p99
      %p101 = scmp.ne.s32.totalorder %s92, %s93
      %p102 = scmp.eq.s32.totalorder %s21, 0
      %p103 = por %p101, %p102
      %p104 = scmp.ne.s32.totalorder %s92, %s93
      %p105 = scmp.eq.s32.totalorder %s22, 3
      %p106 = por %p104, %p105
      %p108 = scmp.ne.s32.totalorder %s93, %s107
      %p109 = scmp.eq.s32.totalorder %s22, 0
      %p110 = por %p108, %p109
      %s112 = sadd.s32 %s111, 1
      %p115 = scmp.eq.s32.totalorder %s16, 3
      %p116 = scmp.ne.s32.totalorder %s111, %s113
      %p117 = scmp.eq.s32.totalorder %s16, 0
      %p118 = por %p116, %p117
      %p119 = scmp.ne.s32.totalorder %s111, %s113
      %p120 = scmp.eq.s32.totalorder %s21, 3
      %p121 = por %p119, %p120
      %p122 = scmp.ne.s32.totalorder %s113, %s114
      %p123 = scmp.eq.s32.totalorder %s21, 0
      %p124 = por %p122, %p123
      %p125 = scmp.ne.s32.totalorder %s113, %s114
      %p126 = scmp.eq.s32.totalorder %s22, 3
      %p127 = por %p125, %p126
      %p129 = scmp.ne.s32.totalorder %s114, %s128
      %p130 = scmp.eq.s32.totalorder %s22, 0
      %p131 = por %p129, %p130
      %s133 = sadd.s32 %s132, 1
      %p136 = scmp.eq.s32.totalorder %s16, 3
      %p137 = scmp.ne.s32.totalorder %s132, %s134
      %p138 = scmp.eq.s32.totalorder %s16, 0
      %p139 = por %p137, %p138
      %p140 = scmp.ne.s32.totalorder %s132, %s134
      %p141 = scmp.eq.s32.totalorder %s21, 3
      %p142 = por %p140, %p141
      %p143 = scmp.ne.s32.totalorder %s134, %s135
      %p144 = scmp.eq.s32.totalorder %s21, 0
      %p145 = por %p143, %p144
      %p146 = scmp.ne.s32.totalorder %s134, %s135
      %p147 = scmp.eq.s32.totalorder %s22, 3
      %p148 = por %p146, %p147
      %p150 = scmp.ne.s32.totalorder %s135, %s149
      %p151 = scmp.eq.s32.totalorder %s22, 0
      %p152 = por %p150, %p151
      %s154 = sadd.s32 %s153, 1
      %p157 = scmp.eq.s32.totalorder %s16, 3
      %p158 = scmp.ne.s32.totalorder %s153, %s155
      %p159 = scmp.eq.s32.totalorder %s16, 0
      %p160 = por %p158, %p159
      %p161 = scmp.ne.s32.totalorder %s153, %s155
      %p162 = scmp.eq.s32.totalorder %s21, 3
      %p163 = por %p161, %p162
      %p164 = scmp.ne.s32.totalorder %s155, %s156
      %p165 = scmp.eq.s32.totalorder %s21, 0
      %p166 = por %p164, %p165
      %p167 = scmp.ne.s32.totalorder %s155, %s156
      %p168 = scmp.eq.s32.totalorder %s22, 3
      %p169 = por %p167, %p168
      %p171 = scmp.ne.s32.totalorder %s156, %s170
      %p172 = scmp.eq.s32.totalorder %s22, 0
      %p173 = por %p171, %p172
      %s175 = sadd.s32 %s174, 1
      %p178 = scmp.eq.s32.totalorder %s16, 3
      %p179 = scmp.ne.s32.totalorder %s174, %s176
      %p180 = scmp.eq.s32.totalorder %s16, 0
      %p181 = por %p179, %p180
      %p182 = scmp.ne.s32.totalorder %s174, %s176
      %p183 = scmp.eq.s32.totalorder %s21, 3
      %p184 = por %p182, %p183
      %p185 = scmp.ne.s32.totalorder %s176, %s177
      %p186 = scmp.eq.s32.totalorder %s21, 0
      %p187 = por %p185, %p186
      %p188 = scmp.ne.s32.totalorder %s176, %s177
      %p189 = scmp.eq.s32.totalorder %s22, 3
      %p190 = por %p188, %p189
      %p192 = scmp.ne.s32.totalorder %s177, %s191
      %p193 = scmp.eq.s32.totalorder %s22, 0
      %p194 = por %p192, %p193
      %s195 = ssub.s32 %s23, %s35
      %s196 = ssub.s32 %s24, %s31
      %s197 = sor.u32 %s195, %s196
      %p198 = scmp.eq.s32.totalorder %s197, 0
      %s200 = sadd.s32 %s199, 1
      %s201 = scalar_select %p198, %s199, %s200
      %p204 = pneg %p198
      %p205 = scmp.eq.s32.totalorder %s16, 3
      %p206 = por %p204, %p205
      %p207 = scmp.ne.s32.totalorder %s199, %s202
      %p208 = scmp.eq.s32.totalorder %s16, 0
      %p209 = por %p207, %p208
      %p210 = scmp.ne.s32.totalorder %s199, %s202
      %p211 = scmp.eq.s32.totalorder %s21, 3
      %p212 = por %p210, %p211
      %p213 = scmp.ne.s32.totalorder %s202, %s203
      %p214 = scmp.eq.s32.totalorder %s21, 0
      %p215 = por %p213, %p214
      %p216 = scmp.ne.s32.totalorder %s202, %s203
      %p217 = scmp.eq.s32.totalorder %s22, 3
      %p218 = por %p216, %p217
      %p220 = scmp.ne.s32.totalorder %s203, %s219
      %p221 = scmp.eq.s32.totalorder %s22, 0
      %p222 = por %p220, %p221
      %s223 = ssub.s32 %s23, %s35
      %s224 = ssub.s32 %s24, %s31
      %s225 = sor.u32 %s223, %s224
      %p226 = scmp.eq.s32.totalorder %s225, 0
      %s228 = sadd.s32 %s227, 1
      %s229 = scalar_select %p226, %s227, %s228
      %p232 = pneg %p226
      %p233 = scmp.eq.s32.totalorder %s16, 3
      %p234 = por %p232, %p233
      %p235 = scmp.ne.s32.totalorder %s227, %s230
      %p236 = scmp.eq.s32.totalorder %s16, 0
      %p237 = por %p235, %p236
      %p238 = scmp.ne.s32.totalorder %s227, %s230
      %p239 = scmp.eq.s32.totalorder %s21, 3
      %p240 = por %p238, %p239
      %p241 = scmp.ne.s32.totalorder %s230, %s231
      %p242 = scmp.eq.s32.totalorder %s21, 0
      %p243 = por %p241, %p242
      %p244 = scmp.ne.s32.totalorder %s230, %s231
      %p245 = scmp.eq.s32.totalorder %s22, 3
      %p246 = por %p244, %p245
      %p248 = scmp.ne.s32.totalorder %s231, %s247
      %p249 = scmp.eq.s32.totalorder %s22, 0
      %p250 = por %p248, %p249
      %p251 = scmp.le.s32.totalorder 1, %s16
      %p252 = scmp.lt.s32.totalorder %s16, 5
      %p253 = pnand %p251, %p252
      %p254 = pneg %p253
      // Predicated region
      $region9: #{self_attention_pallas.1} parent=5 // pred_check
        _
      $region10: #{self_attention_pallas.1} parent=5 // pred_check_branch
        %256 = sbr.rel (%p253) target = $region12
      $region11: #{self_attention_pallas.1} parent=5 // pred_region
        %s257 = ssub.s32 %s16, 1
        // Predicated region
        $region13: #{self_attention_pallas.1} parent=11 // pred_check
          %p258 = pneg %p103
        $region14: #{self_attention_pallas.1} parent=11 // pred_check_branch
          %260 = sbr.rel (%p258) target = $region16
        $region15: #{self_attention_pallas.1} parent=11 // pred_region
          _
        $region16: #{self_attention_pallas.1} parent=11 // pred_fallthru
          _
        // Predicated region
        $region17: #{self_attention_pallas.1} parent=11 // pred_check
          %p261 = pneg %p124
        $region18: #{self_attention_pallas.1} parent=11 // pred_check_branch
          %263 = sbr.rel (%p261) target = $region20
        $region19: #{self_attention_pallas.1} parent=11 // pred_region
          _
        $region20: #{self_attention_pallas.1} parent=11 // pred_fallthru
          _
        // Predicated region
        $region21: #{self_attention_pallas.1} parent=11 // pred_check
          %p264 = pneg %p145
        $region22: #{self_attention_pallas.1} parent=11 // pred_check_branch
          %266 = sbr.rel (%p264) target = $region24
        $region23: #{self_attention_pallas.1} parent=11 // pred_region
          _
        $region24: #{self_attention_pallas.1} parent=11 // pred_fallthru
          _
        // Predicated region
        $region25: #{self_attention_pallas.1} parent=11 // pred_check
          %p267 = pneg %p166
        $region26: #{self_attention_pallas.1} parent=11 // pred_check_branch
          %269 = sbr.rel (%p267) target = $region28
        $region27: #{self_attention_pallas.1} parent=11 // pred_region
          _
        $region28: #{self_attention_pallas.1} parent=11 // pred_fallthru
          _
        // Predicated region
        $region29: #{self_attention_pallas.1} parent=11 // pred_check
          %p270 = pneg %p187
        $region30: #{self_attention_pallas.1} parent=11 // pred_check_branch
          %272 = sbr.rel (%p270) target = $region32
        $region31: #{self_attention_pallas.1} parent=11 // pred_region
          _
        $region32: #{self_attention_pallas.1} parent=11 // pred_fallthru
          _
      $region12: #{self_attention_pallas.1} parent=5 // pred_fallthru
        _
      %p273 = scmp.lt.s32.totalorder %s16, 4
      // Predicated region
      $region33: #{self_attention_pallas.1} parent=5 // pred_check
        %p274 = pneg %p273
      $region34: #{self_attention_pallas.1} parent=5 // pred_check_branch
        %276 = sbr.rel (%p274) target = $region36
      $region35: #{self_attention_pallas.1} parent=5 // pred_region
        // Predicated region
        $region37: #{self_attention_pallas.1} parent=35 // pred_check
          %p277 = pneg %p48
        $region38: #{self_attention_pallas.1} parent=35 // pred_check_branch
          %279 = sbr.rel (%p277) target = $region40
        $region39: #{self_attention_pallas.1} parent=35 // pred_region
          %p280 = scmp.lt.s32.totalorder %s23, 1
          %s281 = scalar_select %p280, %s23, 1
          %s282 = smul.addr %s281, 8
          %s283 = smul.addr %s282, 8
          %s284 = scalar_lea.vmem %s0, %s283
        $region40: #{self_attention_pallas.1} parent=35 // pred_fallthru
          _
        // Predicated region
        $region41: #{self_attention_pallas.1} parent=35 // pred_check
          %p285 = pneg %p76
        $region42: #{self_attention_pallas.1} parent=35 // pred_check_branch
          %287 = sbr.rel (%p285) target = $region44
        $region43: #{self_attention_pallas.1} parent=35 // pred_region
          %s288 = sand.u32 %s66, 1
          %s289 = sand.u32 %s66, 1
          %s290 = smul.addr %s289, 32
          %s291 = scalar_lea.vmem [#allocation3], %s290
          %s292 = smul.addr %s23, 8
          %s293 = sadd.s32 %s24, %s292
          %s294 = smul.addr %s293, 8
          %s295 = scalar_lea.vmem %s1, %s294
          // Predicated region
          $region45: #{self_attention_pallas.1} parent=43 // pred_check
            _
          $region46: #{self_attention_pallas.1} parent=43 // pred_check_branch
            %297 = sbr.rel (0) target = $region48
          $region47: #{self_attention_pallas.1} parent=43 // pred_region
            // Predicated region
            $region49: #{self_attention_pallas.1} parent=47 // pred_check
              _
            $region50: #{self_attention_pallas.1} parent=47 // pred_check_branch
              %299 = sbr.rel (0) target = $region52
            $region51: #{self_attention_pallas.1} parent=47 // pred_region
              // Predicated region
              $region64: #{self_attention_pallas.1} parent=51 // pred_check
                _
              $region65: #{self_attention_pallas.1} parent=51 // pred_check_branch
                %320 = sbr.rel (0) target = $region67
              $region66: #{self_attention_pallas.1} parent=51 // pred_region
                loop: start=0, step=1, limit=1
                $region68: #{self_attention_pallas.1} parent=66 // loop_pre_header
                  _
                $region69: #{self_attention_pallas.1} parent=66 // loop_header
                  %s322 = sphi 0, %s326
                  %p323 = scmp.ge.s32.totalorder %s322, 1
                  %s327 = sphi %s295, %s295
                  %s328 = sphi %s291, %s291
                $region70: #{self_attention_pallas.1} parent=66 // loop_header_branch
                  %325 = sbr.rel (%p323) target = $region74
                $region71: #{self_attention_pallas.1} parent=66 // loop_body
                  %v329 = vld [vmem:[%s327] sm:$0xff]
                  %330 = vst [vmem:[%s328] sm:$0xff] %v329
                  %v331 = vld [vmem:[%s327 + $0x10] sm:$0xff]
                  %332 = vst [vmem:[%s328 + $0x8] sm:$0xff] %v331
                  %v333 = vld [vmem:[%s327 + $0x20] sm:$0xff]
                  %334 = vst [vmem:[%s328 + $0x10] sm:$0xff] %v333
                  %v335 = vld [vmem:[%s327 + $0x30] sm:$0xff]
                  %336 = vst [vmem:[%s328 + $0x18] sm:$0xff] %v335
                $region72: #{self_attention_pallas.1} parent=66 // loop_footer
                  %s326 = sadd.s32 1, %s322
                $region73: #{self_attention_pallas.1} parent=66 // loop_footer_branch
                  %321 = sbr.rel target = $region69
                $region74: #{self_attention_pallas.1} parent=66 // loop_exit
                  _
              $region67: #{self_attention_pallas.1} parent=51 // pred_fallthru
                _
              // Predicated region
              $region75: #{self_attention_pallas.1} parent=51 // pred_check
                _
              $region76: #{self_attention_pallas.1} parent=51 // pred_check_branch
                %338 = sbr.rel target = $region78
              $region77: #{self_attention_pallas.1} parent=51 // pred_region
                _
              $region78: #{self_attention_pallas.1} parent=51 // pred_fallthru
                _
            $region52: #{self_attention_pallas.1} parent=47 // pred_fallthru
              _
            // Predicated region
            $region53: #{self_attention_pallas.1} parent=47 // pred_check
              _
            $region54: #{self_attention_pallas.1} parent=47 // pred_check_branch
              %301 = sbr.rel target = $region56
            $region55: #{self_attention_pallas.1} parent=47 // pred_region
              loop: start=0, step=1, limit=1
              $region57: #{self_attention_pallas.1} parent=55 // loop_pre_header
                _
              $region58: #{self_attention_pallas.1} parent=55 // loop_header
                %s304 = sphi 0, %s308
                %p305 = scmp.ge.s32.totalorder %s304, 1
                %s309 = sphi %s295, %s295
                %s310 = sphi %s291, %s291
              $region59: #{self_attention_pallas.1} parent=55 // loop_header_branch
                %307 = sbr.rel (%p305) target = $region63
              $region60: #{self_attention_pallas.1} parent=55 // loop_body
                %v311 = vld [vmem:[%s309] sm:$0xff]
                %312 = vst [vmem:[%s310] sm:$0xff] %v311
                %v313 = vld [vmem:[%s309 + $0x10] sm:$0xff]
                %314 = vst [vmem:[%s310 + $0x8] sm:$0xff] %v313
                %v315 = vld [vmem:[%s309 + $0x20] sm:$0xff]
                %316 = vst [vmem:[%s310 + $0x10] sm:$0xff] %v315
                %v317 = vld [vmem:[%s309 + $0x30] sm:$0xff]
                %318 = vst [vmem:[%s310 + $0x18] sm:$0xff] %v317
              $region61: #{self_attention_pallas.1} parent=55 // loop_footer
                %s308 = sadd.s32 1, %s304
              $region62: #{self_attention_pallas.1} parent=55 // loop_footer_branch
                %303 = sbr.rel target = $region58
              $region63: #{self_attention_pallas.1} parent=55 // loop_exit
                _
            $region56: #{self_attention_pallas.1} parent=47 // pred_fallthru
              _
          $region48: #{self_attention_pallas.1} parent=43 // pred_fallthru
            _
          %339 = vnop
        $region44: #{self_attention_pallas.1} parent=35 // pred_fallthru
          _
      $region36: #{self_attention_pallas.1} parent=5 // pred_fallthru
        _
      %p340 = scmp.le.s32.totalorder 1, %s16
      %p341 = scmp.lt.s32.totalorder %s16, 5
      %p342 = pnand %p340, %p341
      %p343 = pneg %p342
      // Predicated region
      $region79: #{self_attention_pallas.1} parent=5 // pred_check
        _
      $region80: #{self_attention_pallas.1} parent=5 // pred_check_branch
        %345 = sbr.rel (%p342) target = $region82
      $region81: #{self_attention_pallas.1} parent=5 // pred_region
        %s346 = ssub.s32 %s16, 1
        %s347 = sand.u32 %s69, 1
        %s348 = sand.u32 %s69, 1
        %s349 = smul.addr %s348, 32
        %s350 = scalar_lea.vmem [#allocation3], %s349
        // Predicated region
        $region83: #{self_attention_pallas.1} parent=81 // pred_check
          %p351 = pneg %p82
        $region84: #{self_attention_pallas.1} parent=81 // pred_check_branch
          %353 = sbr.rel (%p351) target = $region86
        $region85: #{self_attention_pallas.1} parent=81 // pred_region
          _
        $region86: #{self_attention_pallas.1} parent=81 // pred_fallthru
          _
        %p354 = scmp.lt.s32.totalorder %s25, 1
        %s355 = scalar_select %p354, %s25, 1
        %s356 = smul.addr %s355, 8
        %s357 = smul.addr %s356, 8
        %s358 = scalar_lea.vmem %s0, %s357
        %p359 = pneg %p54
        %p360 = pneg %p51
        %s361 = sand.u32 %s69, 1
        %s362 = sand.u32 %s69, 1
        %s363 = smul.addr %s362, 32
        %s364 = scalar_lea.vmem [#allocation3], %s363
        %p365 = pneg %p82
        %p366 = pneg %p79
        %p367 = pneg %p103
        %p368 = pneg %p100
        %p369 = pneg %p124
        %p370 = pneg %p121
        %p371 = pneg %p145
        %p372 = pneg %p142
        %p373 = pneg %p166
        %p374 = pneg %p163
        %p375 = pneg %p187
        %p376 = pneg %p184
        %p377 = pneg %p215
        %p378 = pneg %p212
        %s379 = sand.u32 %s202, 1
        %s380 = sand.u32 %s202, 1
        %s381 = smul.addr %s380, 32
        %s382 = scalar_lea.vmem [#allocation4], %s381
        %p383 = pneg %p243
        %p384 = pneg %p240
        %s385 = smul.u32 16, %s26
        %p386 = scmp.lt.s32.totalorder %s25, 1
        %s387 = scalar_select %p386, %s25, 1
        %p388 = scmp.lt.s32.totalorder %s385, 31
        %s389 = scalar_select %p388, %s385, 31
        %s390 = smul.addr %s389, 2
        %s391 = smul.addr %s387, 64
        %s392 = sadd.s32 %s390, %s391
        %s393 = smul.addr %s392, 8
        %s394 = scalar_lea.vmem %s8, %s393
        %p395 = scmp.lt.s32.totalorder %s25, 1
        %s396 = scalar_select %p395, %s25, 1
        %s397 = smul.addr %s396, 8
        %s398 = smul.addr %s397, 8
        %s399 = scalar_lea.vmem %s0, %s398
        %s400 = smul.u32 16, %s26
        %p401 = scmp.lt.s32.totalorder %s25, 1
        %s402 = scalar_select %p401, %s25, 1
        %p403 = scmp.lt.s32.totalorder %s400, 31
        %s404 = scalar_select %p403, %s400, 31
        %s405 = smul.addr %s404, 2
        %s406 = smul.addr %s402, 64
        %s407 = sadd.s32 %s405, %s406
        %s408 = smul.addr %s407, 8
        %s409 = scalar_lea.vmem %s8, %s408
        %s410 = smul.u32 16, %s26
        %v411 = vld [vmem:[%s399] sm:$0xff]
        %v412 = vld [vmem:[%s399 + $0x8] sm:$0xff]
        %v413 = vld [vmem:[%s399 + $0x10] sm:$0xff]
        %v414 = vld [vmem:[%s399 + $0x18] sm:$0xff]
        %v415 = vld [vmem:[%s399 + $0x20] sm:$0xff]
        %v416 = vld [vmem:[%s399 + $0x28] sm:$0xff]
        %v417 = vld [vmem:[%s399 + $0x30] sm:$0xff]
        %v418 = vld [vmem:[%s399 + $0x38] sm:$0xff]
        %v419 = vld [vmem:[%s350] sm:$0xff]
        %v420 = vld [vmem:[%s350 + $0x8] sm:$0xff]
        %v421 = vld [vmem:[%s350 + $0x10] sm:$0xff]
        %v422 = vld [vmem:[%s350 + $0x18] sm:$0xff]
        %v423 = vld [vmem:[%s4] sm:$0xff]
        %v424 = vld [vmem:[%s4 + $0x8] sm:$0xff]
        %v425 = vld [vmem:[%s4 + $0x10] sm:$0xff]
        %v426 = vld [vmem:[%s4 + $0x18] sm:$0xff]
        %v427 = vld [vmem:[%s4 + $0x20] sm:$0xf]
        %v428 = vld [vmem:[%s5] sm:$0xff]
        %v429 = vld [vmem:[%s5 + $0x8] sm:$0xff]
        %v430 = vld [vmem:[%s5 + $0x10] sm:$0xff]
        %v431 = vld [vmem:[%s5 + $0x18] sm:$0xff]
        %v432 = vld [vmem:[%s5 + $0x20] sm:$0xf]
        %434 = vset.pattern.permute.xlu0 0
        %435 = vperm.xlu0 %434, %v428
        %v436 = vpop.permute.xlu0 %435
        %439 = vset.pattern.permute.xlu0 0
        %440 = vperm.xlu0 %439, %v429
        %v441 = vpop.permute.xlu0 %440
        %444 = vset.pattern.permute.xlu0 0
        %445 = vperm.xlu0 %444, %v430
        %v446 = vpop.permute.xlu0 %445
        %449 = vset.pattern.permute.xlu0 0
        %450 = vperm.xlu0 %449, %v431
        %v451 = vpop.permute.xlu0 %450
        %454 = vset.pattern.permute.xlu0 0
        %455 = vperm.xlu0 %454, %v432
        %v456 = vpop.permute.xlu0 %455
        %vm458 = vcmask 261120
        %v460 = vsel %vm458, %v423, 0
        %v463 = vsel %vm458, %v424, 0
        %v466 = vsel %vm458, %v425, 0
        %v469 = vsel %vm458, %v426, 0
        %v472 = vsel %vm458, %v427, 0
        %474 = vmatprep.subr.mxu0 %v412
        %475 = vmatpush1.msra.mxu0 %v411
        %476 = vmatprep.subr.mxu0 %v414
        %477 = vmatpush1.msra.mxu0 %v413
        %478 = vmatprep.subr.mxu0 %v416
        %479 = vmatpush1.msra.mxu0 %v415
        %480 = vmatprep.subr.mxu0 %v418
        %481 = vmatpush1.msra.mxu0 %v417
        %482 = vmatprep.subr.mxu0 0.0
        %483 = vmatpush1.msra.mxu0 0.0
        %484 = vmatprep.subr.mxu0 0.0
        %485 = vmatpush1.msra.mxu0 0.0
        %486 = vmatprep.subr.mxu0 0.0
        %487 = vmatpush1.msra.mxu0 0.0
        %488 = vmatprep.subr.mxu0 0.0
        %489 = vmatpush1.msra.mxu0 0.0
        %490 = vmatprep.subr.mxu0 0.0
        %491 = vmatpush1.msra.mxu0 0.0
        %492 = vmatprep.subr.mxu0 0.0
        %493 = vmatpush1.msra.mxu0 0.0
        %494 = vmatprep.subr.mxu0 0.0
        %495 = vmatpush1.msra.mxu0 0.0
        %496 = vmatprep.subr.mxu0 0.0
        %497 = vmatpush1.msra.mxu0 0.0
        %498 = vmatprep.subr.mxu0 0.0
        %499 = vmatpush1.msra.mxu0 0.0
        %500 = vmatprep.subr.mxu0 0.0
        %501 = vmatpush1.msra.mxu0 0.0
        %502 = vmatprep.subr.mxu0 0.0
        %503 = vmatpush1.msra.mxu0 0.0
        %504 = vmatprep.subr.mxu0 0.0
        %505 = vmatpush1.msra.mxu0 0.0
        %506 = vmatprep.subr.mxu0 0.0
        %507 = vmatpush1.msra.mxu0 0.0
        %508 = vmatprep.subr.mxu0 0.0
        %509 = vmatpush1.msra.mxu0 0.0
        %510 = vmatprep.subr.mxu0 0.0
        %511 = vmatpush1.msra.mxu0 0.0
        %512 = vmatprep.subr.mxu0 0.0
        %513 = vmatpush1.msra.mxu0 0.0
        %514 = vmatprep.subr.mxu0 0.0
        %515 = vmatpush1.msra.mxu0 0.0
        %516 = vmatprep.subr.mxu0 0.0
        %517 = vmatpush1.msra.mxu0 0.0
        %518 = vmatprep.subr.mxu0 0.0
        %519 = vmatpush1.msra.mxu0 0.0
        %520 = vmatprep.subr.mxu0 0.0
        %521 = vmatpush1.msra.mxu0 0.0
        %522 = vmatprep.subr.mxu0 0.0
        %523 = vmatpush1.msra.mxu0 0.0
        %524 = vmatprep.subr.mxu0 0.0
        %525 = vmatpush1.msra.mxu0 0.0
        %526 = vmatprep.subr.mxu0 0.0
        %527 = vmatpush1.msra.mxu0 0.0
        %528 = vmatprep.subr.mxu0 0.0
        %529 = vmatpush1.msra.mxu0 0.0
        %530 = vmatprep.subr.mxu0 0.0
        %531 = vmatpush1.msra.mxu0 0.0
        %532 = vmatprep.subr.mxu0 0.0
        %533 = vmatpush1.msra.mxu0 0.0
        %534 = vmatprep.subr.mxu0 0.0
        %535 = vmatpush1.msra.mxu0 0.0
        %536 = vmatprep.subr.mxu0 0.0
        %537 = vmatpush1.msra.mxu0 0.0
        %538 = vmatprep.mubr.f32.mxu0 0.0
        %539 = vmatmul.mubr.f32.gmra.mrb[0].mxu0 %v460
        %v540 = vpop.f32.mrb[0].mxu0
        %v541 = vadd.f32 %v436, %v540
        %v542 = vpop.f32.mrb[0].mxu0
        %v543 = vadd.f32 %v436, %v542
        %544 = vmatprep.mubr.f32.mxu0 0.0
        %545 = vmatmul.mubr.f32.gmra.mrb[0].mxu0 %v463
        %v546 = vpop.f32.mrb[0].mxu0
        %v547 = vadd.f32 %v441, %v546
        %v548 = vpop.f32.mrb[0].mxu0
        %v549 = vadd.f32 %v441, %v548
        %550 = vmatprep.mubr.f32.mxu0 0.0
        %551 = vmatmul.mubr.f32.gmra.mrb[0].mxu0 %v466
        %v552 = vpop.f32.mrb[0].mxu0
        %v553 = vadd.f32 %v446, %v552
        %v554 = vpop.f32.mrb[0].mxu0
        %v555 = vadd.f32 %v446, %v554
        %556 = vmatprep.mubr.f32.mxu0 0.0
        %557 = vmatmul.mubr.f32.gmra.mrb[0].mxu0 %v469
        %v558 = vpop.f32.mrb[0].mxu0
        %v559 = vadd.f32 %v451, %v558
        %v560 = vpop.f32.mrb[0].mxu0
        %v561 = vadd.f32 %v451, %v560
        %562 = vmatprep.mubr.f32.mxu0 0.0
        %563 = vmatmul.mubr.f32.gmra.mrb[0].mxu0 %v472
        %v564 = vpop.f32.mrb[0].mxu0
        %v565 = vadd.f32 %v456, %v564
        %v566 = vpop.f32.mrb[0].mxu0
        %v567 = vadd.f32 %v456, %v566
        %568 = vdwg.mxu0
        %v569 = vld [vmem:[%s2] sm:$0xf]
        %v570 = vld [vmem:[%s3] sm:$0xf]
        %572 = vset.pattern.permute.xlu0 0
        %573 = vperm.xlu0 %572, %v570
        %v574 = vpop.permute.xlu0 %573
        %v577 = vsel %vm458, %v569, 0
        %579 = vmatprep.subr.mxu0 0.0
        %580 = vmatpush1.msra.mxu0 %v419
        %581 = vmatprep.subr.mxu0 0.0
        %582 = vmatpush1.msra.mxu0 %v420
        %583 = vmatprep.subr.mxu0 0.0
        %584 = vmatpush1.msra.mxu0 %v421
        %585 = vmatprep.subr.mxu0 0.0
        %586 = vmatpush1.msra.mxu0 %v422
        %587 = vmatprep.subr.mxu0 0.0
        %588 = vmatpush1.msra.mxu0 0.0
        %589 = vmatprep.subr.mxu0 0.0
        %590 = vmatpush1.msra.mxu0 0.0
        %591 = vmatprep.subr.mxu0 0.0
        %592 = vmatpush1.msra.mxu0 0.0
        %593 = vmatprep.subr.mxu0 0.0
        %594 = vmatpush1.msra.mxu0 0.0
        %595 = vmatprep.subr.mxu0 0.0
        %596 = vmatpush1.msra.mxu0 0.0
        %597 = vmatprep.subr.mxu0 0.0
        %598 = vmatpush1.msra.mxu0 0.0
        %599 = vmatprep.subr.mxu0 0.0
        %600 = vmatpush1.msra.mxu0 0.0
        %601 = vmatprep.subr.mxu0 0.0
        %602 = vmatpush1.msra.mxu0 0.0
        %603 = vmatprep.subr.mxu0 0.0
        %604 = vmatpush1.msra.mxu0 0.0
        %605 = vmatprep.subr.mxu0 0.0
        %606 = vmatpush1.msra.mxu0 0.0
        %607 = vmatprep.subr.mxu0 0.0
        %608 = vmatpush1.msra.mxu0 0.0
        %609 = vmatprep.subr.mxu0 0.0
        %610 = vmatpush1.msra.mxu0 0.0
        %611 = vmatprep.subr.mxu0 0.0
        %612 = vmatpush1.msra.mxu0 0.0
        %613 = vmatprep.subr.mxu0 0.0
        %614 = vmatpush1.msra.mxu0 0.0
        %615 = vmatprep.subr.mxu0 0.0
        %616 = vmatpush1.msra.mxu0 0.0
        %617 = vmatprep.subr.mxu0 0.0
        %618 = vmatpush1.msra.mxu0 0.0
        %619 = vmatprep.subr.mxu0 0.0
        %620 = vmatpush1.msra.mxu0 0.0
        %621 = vmatprep.subr.mxu0 0.0
        %622 = vmatpush1.msra.mxu0 0.0
        %623 = vmatprep.subr.mxu0 0.0
        %624 = vmatpush1.msra.mxu0 0.0
        %625 = vmatprep.subr.mxu0 0.0
        %626 = vmatpush1.msra.mxu0 0.0
        %627 = vmatprep.subr.mxu0 0.0
        %628 = vmatpush1.msra.mxu0 0.0
        %629 = vmatprep.subr.mxu0 0.0
        %630 = vmatpush1.msra.mxu0 0.0
        %631 = vmatprep.subr.mxu0 0.0
        %632 = vmatpush1.msra.mxu0 0.0
        %633 = vmatprep.subr.mxu0 0.0
        %634 = vmatpush1.msra.mxu0 0.0
        %635 = vmatprep.subr.mxu0 0.0
        %636 = vmatpush1.msra.mxu0 0.0
        %637 = vmatprep.subr.mxu0 0.0
        %638 = vmatpush1.msra.mxu0 0.0
        %639 = vmatprep.subr.mxu0 0.0
        %640 = vmatpush1.msra.mxu0 0.0
        %641 = vmatprep.subr.mxu0 0.0
        %642 = vmatpush1.msra.mxu0 0.0
        %643 = vmatprep.mubr.f32.mxu0 0.0
        %644 = vmatmul.mubr.f32.gmra.mrb[0].mxu0 %v577
        %v645 = vpop.f32.mrb[0].mxu0
        %v646 = vadd.f32 %v574, %v645
        %v647 = vpop.f32.mrb[0].mxu0
        %648 = vdwg.mxu0
        %649 = vxpose.xlu0.b32.start [1/16] %v646, 128
        %650 = vxpose.xlu0.b32.cont [2/16] 0.0, 128
        %651 = vxpose.xlu0.b32.cont [3/16] 0.0, 128
        %652 = vxpose.xlu0.b32.cont [4/16] 0.0, 128
        %653 = vxpose.xlu0.b32.cont [5/16] 0.0, 128
        %654 = vxpose.xlu0.b32.cont [6/16] 0.0, 128
        %655 = vxpose.xlu0.b32.cont [7/16] 0.0, 128
        %656 = vxpose.xlu0.b32.cont [8/16] 0.0, 128
        %657 = vxpose.xlu0.b32.cont [9/16] 0.0, 128
        %658 = vxpose.xlu0.b32.cont [10/16] 0.0, 128
        %659 = vxpose.xlu0.b32.cont [11/16] 0.0, 128
        %660 = vxpose.xlu0.b32.cont [12/16] 0.0, 128
        %661 = vxpose.xlu0.b32.cont [13/16] 0.0, 128
        %662 = vxpose.xlu0.b32.cont [14/16] 0.0, 128
        %663 = vxpose.xlu0.b32.cont [15/16] 0.0, 128
        %664 = vxpose.xlu0.b32.end [16/16] 0.0, 128
        %v665 = vpop.trf.xlu0
        %v666 = vpop.trf.xlu0
        %v667 = vpop.trf.xlu0
        %v668 = vpop.trf.xlu0
        %v669 = vpop.trf.xlu0
        %v670 = vpop.trf.xlu0
        %v671 = vpop.trf.xlu0
        %v672 = vpop.trf.xlu0
        %v673 = vpop.trf.xlu0
        %v674 = vpop.trf.xlu0
        %v675 = vpop.trf.xlu0
        %v676 = vpop.trf.xlu0
        %v677 = vpop.trf.xlu0
        %v678 = vpop.trf.xlu0
        %v679 = vpop.trf.xlu0
        %v680 = vpop.trf.xlu0
        %vm681 = vcmask 31744
        %v683 = vsel %vm681, %v665, 0
        %v686 = vsel %vm681, %v666, 0
        %v689 = vsel %vm681, %v667, 0
        %v692 = vsel %vm681, %v668, 0
        %v695 = vsel %vm681, %v669, 0
        %v698 = vsel %vm681, %v670, 0
        %v701 = vsel %vm681, %v671, 0
        %v704 = vsel %vm681, %v672, 0
        %v707 = vsel %vm681, %v673, 0
        %v710 = vsel %vm681, %v674, 0
        %v713 = vsel %vm681, %v675, 0
        %v716 = vsel %vm681, %v676, 0
        %v719 = vsel %vm681, %v677, 0
        %v722 = vsel %vm681, %v678, 0
        %v725 = vsel %vm681, %v679, 0
        %v728 = vsel %vm681, %v680, 0
        %vm730 = vcmask 1043456
        %v732 = vsel %vm730, %v565, 0
        %v735 = vsel %vm730, %v567, 0
        %737 = vmatprep.subr.mxu0 %v735
        %738 = vmatpush1.msra.mxu0 %v732
        %739 = vmatprep.subr.mxu0 0.0
        %740 = vmatpush1.msra.mxu0 0.0
        %741 = vmatprep.subr.mxu0 0.0
        %742 = vmatpush1.msra.mxu0 0.0
        %743 = vmatprep.subr.mxu0 0.0
        %744 = vmatpush1.msra.mxu0 0.0
        %745 = vmatprep.subr.mxu0 0.0
        %746 = vmatpush1.msra.mxu0 0.0
        %747 = vmatprep.subr.mxu0 0.0
        %748 = vmatpush1.msra.mxu0 0.0
        %749 = vmatprep.subr.mxu0 0.0
        %750 = vmatpush1.msra.mxu0 0.0
        %751 = vmatprep.subr.mxu0 0.0
        %752 = vmatpush1.msra.mxu0 0.0
        %753 = vmatprep.subr.mxu0 0.0
        %754 = vmatpush1.msra.mxu0 0.0
        %755 = vmatprep.subr.mxu0 0.0
        %756 = vmatpush1.msra.mxu0 0.0
        %757 = vmatprep.subr.mxu0 0.0
        %758 = vmatpush1.msra.mxu0 0.0
        %759 = vmatprep.subr.mxu0 0.0
        %760 = vmatpush1.msra.mxu0 0.0
        %761 = vmatprep.subr.mxu0 0.0
        %762 = vmatpush1.msra.mxu0 0.0
        %763 = vmatprep.subr.mxu0 0.0
        %764 = vmatpush1.msra.mxu0 0.0
        %765 = vmatprep.subr.mxu0 0.0
        %766 = vmatpush1.msra.mxu0 0.0
        %767 = vmatprep.subr.mxu0 0.0
        %768 = vmatpush1.msra.mxu0 0.0
        %769 = vmatprep.subr.mxu0 0.0
        %770 = vmatpush1.msra.mxu0 0.0
        %771 = vmatprep.subr.mxu0 0.0
        %772 = vmatpush1.msra.mxu0 0.0
        %773 = vmatprep.subr.mxu0 0.0
        %774 = vmatpush1.msra.mxu0 0.0
        %775 = vmatprep.subr.mxu0 0.0
        %776 = vmatpush1.msra.mxu0 0.0
        %777 = vmatprep.subr.mxu0 0.0
        %778 = vmatpush1.msra.mxu0 0.0
        %779 = vmatprep.subr.mxu0 0.0
        %780 = vmatpush1.msra.mxu0 0.0
        %781 = vmatprep.subr.mxu0 0.0
        %782 = vmatpush1.msra.mxu0 0.0
        %783 = vmatprep.subr.mxu0 0.0
        %784 = vmatpush1.msra.mxu0 0.0
        %785 = vmatprep.subr.mxu0 0.0
        %786 = vmatpush1.msra.mxu0 0.0
        %787 = vmatprep.subr.mxu0 0.0
        %788 = vmatpush1.msra.mxu0 0.0
        %789 = vmatprep.subr.mxu0 0.0
        %790 = vmatpush1.msra.mxu0 0.0
        %791 = vmatprep.subr.mxu0 0.0
        %792 = vmatpush1.msra.mxu0 0.0
        %793 = vmatprep.subr.mxu0 0.0
        %794 = vmatpush1.msra.mxu0 0.0
        %795 = vmatprep.subr.mxu0 0.0
        %796 = vmatpush1.msra.mxu0 0.0
        %797 = vmatprep.subr.mxu0 0.0
        %798 = vmatpush1.msra.mxu0 0.0
        %799 = vmatprep.subr.mxu0 0.0
        %800 = vmatpush1.msra.mxu0 0.0
        %801 = vmatprep.mubr.f32.mxu0 0.0
        %802 = vmatmul.mubr.f32.gmra.mrb[0].mxu0 %v683
        %v803 = vpop.f32.mrb[0].mxu0
        %v804 = vadd.f32 0.0, %v803
        %v805 = vpop.f32.mrb[0].mxu0
        %v806 = vadd.f32 0.0, %v805
        %807 = vmatprep.mubr.f32.mxu0 0.0
        %808 = vmatmul.mubr.f32.gmra.mrb[0].mxu0 %v686
        %v809 = vpop.f32.mrb[0].mxu0
        %v810 = vadd.f32 0.0, %v809
        %v811 = vpop.f32.mrb[0].mxu0
        %v812 = vadd.f32 0.0, %v811
        %813 = vmatprep.mubr.f32.mxu0 0.0
        %814 = vmatmul.mubr.f32.gmra.mrb[0].mxu0 %v689
        %v815 = vpop.f32.mrb[0].mxu0
        %v816 = vadd.f32 0.0, %v815
        %v817 = vpop.f32.mrb[0].mxu0
        %v818 = vadd.f32 0.0, %v817
        %819 = vmatprep.mubr.f32.mxu0 0.0
        %820 = vmatmul.mubr.f32.gmra.mrb[0].mxu0 %v692
        %v821 = vpop.f32.mrb[0].mxu0
        %v822 = vadd.f32 0.0, %v821
        %v823 = vpop.f32.mrb[0].mxu0
        %v824 = vadd.f32 0.0, %v823
        %825 = vmatprep.mubr.f32.mxu0 0.0
        %826 = vmatmul.mubr.f32.gmra.mrb[0].mxu0 %v695
        %v827 = vpop.f32.mrb[0].mxu0
        %v828 = vadd.f32 0.0, %v827
        %v829 = vpop.f32.mrb[0].mxu0
        %v830 = vadd.f32 0.0, %v829
        %831 = vmatprep.mubr.f32.mxu0 0.0
        %832 = vmatmul.mubr.f32.gmra.mrb[0].mxu0 %v698
        %v833 = vpop.f32.mrb[0].mxu0
        %v834 = vadd.f32 0.0, %v833
        %v835 = vpop.f32.mrb[0].mxu0
        %v836 = vadd.f32 0.0, %v835
        %837 = vmatprep.mubr.f32.mxu0 0.0
        %838 = vmatmul.mubr.f32.gmra.mrb[0].mxu0 %v701
        %v839 = vpop.f32.mrb[0].mxu0
        %v840 = vadd.f32 0.0, %v839
        %v841 = vpop.f32.mrb[0].mxu0
        %v842 = vadd.f32 0.0, %v841
        %843 = vmatprep.mubr.f32.mxu0 0.0
        %844 = vmatmul.mubr.f32.gmra.mrb[0].mxu0 %v704
        %v845 = vpop.f32.mrb[0].mxu0
        %v846 = vadd.f32 0.0, %v845
        %v847 = vpop.f32.mrb[0].mxu0
        %v848 = vadd.f32 0.0, %v847
        %849 = vmatprep.mubr.f32.mxu0 0.0
        %850 = vmatmul.mubr.f32.gmra.mrb[0].mxu0 %v707
        %v851 = vpop.f32.mrb[0].mxu0
        %v852 = vadd.f32 0.0, %v851
        %v853 = vpop.f32.mrb[0].mxu0
        %v854 = vadd.f32 0.0, %v853
        %855 = vmatprep.mubr.f32.mxu0 0.0
        %856 = vmatmul.mubr.f32.gmra.mrb[0].mxu0 %v710
        %v857 = vpop.f32.mrb[0].mxu0
        %v858 = vadd.f32 0.0, %v857
        %v859 = vpop.f32.mrb[0].mxu0
        %v860 = vadd.f32 0.0, %v859
        %861 = vmatprep.mubr.f32.mxu0 0.0
        %862 = vmatmul.mubr.f32.gmra.mrb[0].mxu0 %v713
        %v863 = vpop.f32.mrb[0].mxu0
        %v864 = vadd.f32 0.0, %v863
        %v865 = vpop.f32.mrb[0].mxu0
        %v866 = vadd.f32 0.0, %v865
        %867 = vmatprep.mubr.f32.mxu0 0.0
        %868 = vmatmul.mubr.f32.gmra.mrb[0].mxu0 %v716
        %v869 = vpop.f32.mrb[0].mxu0
        %v870 = vadd.f32 0.0, %v869
        %v871 = vpop.f32.mrb[0].mxu0
        %v872 = vadd.f32 0.0, %v871
        %873 = vmatprep.mubr.f32.mxu0 0.0
        %874 = vmatmul.mubr.f32.gmra.mrb[0].mxu0 %v719
        %v875 = vpop.f32.mrb[0].mxu0
        %v876 = vadd.f32 0.0, %v875
        %v877 = vpop.f32.mrb[0].mxu0
        %v878 = vadd.f32 0.0, %v877
        %879 = vmatprep.mubr.f32.mxu0 0.0
        %880 = vmatmul.mubr.f32.gmra.mrb[0].mxu0 %v722
        %v881 = vpop.f32.mrb[0].mxu0
        %v882 = vadd.f32 0.0, %v881
        %v883 = vpop.f32.mrb[0].mxu0
        %v884 = vadd.f32 0.0, %v883
        %885 = vmatprep.mubr.f32.mxu0 0.0
        %886 = vmatmul.mubr.f32.gmra.mrb[0].mxu0 %v725
        %v887 = vpop.f32.mrb[0].mxu0
        %v888 = vadd.f32 0.0, %v887
        %v889 = vpop.f32.mrb[0].mxu0
        %v890 = vadd.f32 0.0, %v889
        %891 = vmatprep.mubr.f32.mxu0 0.0
        %892 = vmatmul.mubr.f32.gmra.mrb[0].mxu0 %v728
        %v893 = vpop.f32.mrb[0].mxu0
        %v894 = vadd.f32 0.0, %v893
        %v895 = vpop.f32.mrb[0].mxu0
        %v896 = vadd.f32 0.0, %v895
        %897 = vdwg.mxu0
        %v898 = vmax.f32 %v804, %v806
        %899 = vmax.xlane.f32.xlu0 %v898
        %v900 = vpop.xlane.xlu0 %899
        %v901 = vmax.f32 %v810, %v812
        %902 = vmax.xlane.f32.xlu0 %v901
        %v903 = vpop.xlane.xlu0 %902
        %v904 = vmax.f32 %v816, %v818
        %905 = vmax.xlane.f32.xlu0 %v904
        %v906 = vpop.xlane.xlu0 %905
        %v907 = vmax.f32 %v822, %v824
        %908 = vmax.xlane.f32.xlu0 %v907
        %v909 = vpop.xlane.xlu0 %908
        %v910 = vmax.f32 %v828, %v830
        %911 = vmax.xlane.f32.xlu0 %v910
        %v912 = vpop.xlane.xlu0 %911
        %v913 = vmax.f32 %v834, %v836
        %914 = vmax.xlane.f32.xlu0 %v913
        %v915 = vpop.xlane.xlu0 %914
        %v916 = vmax.f32 %v840, %v842
        %917 = vmax.xlane.f32.xlu0 %v916
        %v918 = vpop.xlane.xlu0 %917
        %v919 = vmax.f32 %v846, %v848
        %920 = vmax.xlane.f32.xlu0 %v919
        %v921 = vpop.xlane.xlu0 %920
        %v922 = vmax.f32 %v852, %v854
        %923 = vmax.xlane.f32.xlu0 %v922
        %v924 = vpop.xlane.xlu0 %923
        %v925 = vmax.f32 %v858, %v860
        %926 = vmax.xlane.f32.xlu0 %v925
        %v927 = vpop.xlane.xlu0 %926
        %v928 = vmax.f32 %v864, %v866
        %929 = vmax.xlane.f32.xlu0 %v928
        %v930 = vpop.xlane.xlu0 %929
        %v931 = vmax.f32 %v870, %v872
        %932 = vmax.xlane.f32.xlu0 %v931
        %v933 = vpop.xlane.xlu0 %932
        %v934 = vmax.f32 %v876, %v878
        %935 = vmax.xlane.f32.xlu0 %v934
        %v936 = vpop.xlane.xlu0 %935
        %v937 = vmax.f32 %v882, %v884
        %938 = vmax.xlane.f32.xlu0 %v937
        %v939 = vpop.xlane.xlu0 %938
        %v940 = vmax.f32 %v888, %v890
        %941 = vmax.xlane.f32.xlu0 %v940
        %v942 = vpop.xlane.xlu0 %941
        %v943 = vmax.f32 %v894, %v896
        %944 = vmax.xlane.f32.xlu0 %v943
        %v945 = vpop.xlane.xlu0 %944
        %v946 = vsub.f32 %v804, %v900
        %v947 = vsub.f32 %v806, %v900
        %v948 = vsub.f32 %v810, %v903
        %v949 = vsub.f32 %v812, %v903
        %v950 = vsub.f32 %v816, %v906
        %v951 = vsub.f32 %v818, %v906
        %v952 = vsub.f32 %v822, %v909
        %v953 = vsub.f32 %v824, %v909
        %v954 = vsub.f32 %v828, %v912
        %v955 = vsub.f32 %v830, %v912
        %v956 = vsub.f32 %v834, %v915
        %v957 = vsub.f32 %v836, %v915
        %v958 = vsub.f32 %v840, %v918
        %v959 = vsub.f32 %v842, %v918
        %v960 = vsub.f32 %v846, %v921
        %v961 = vsub.f32 %v848, %v921
        %v962 = vsub.f32 %v852, %v924
        %v963 = vsub.f32 %v854, %v924
        %v964 = vsub.f32 %v858, %v927
        %v965 = vsub.f32 %v860, %v927
        %v966 = vsub.f32 %v864, %v930
        %v967 = vsub.f32 %v866, %v930
        %v968 = vsub.f32 %v870, %v933
        %v969 = vsub.f32 %v872, %v933
        %v970 = vsub.f32 %v876, %v936
        %v971 = vsub.f32 %v878, %v936
        %v972 = vsub.f32 %v882, %v939
        %v973 = vsub.f32 %v884, %v939
        %v974 = vsub.f32 %v888, %v942
        %v975 = vsub.f32 %v890, %v942
        %v976 = vsub.f32 %v894, %v945
        %v977 = vsub.f32 %v896, %v945
        %v978 = vmul.f32 %v946, 1.442695
        %v979 = vpow.pop %v978
        %v980 = vmul.f32 %v947, 1.442695
        %v981 = vpow.pop %v980
        %v982 = vmul.f32 %v948, 1.442695
        %v983 = vpow.pop %v982
        %v984 = vmul.f32 %v949, 1.442695
        %v985 = vpow.pop %v984
        %v986 = vmul.f32 %v950, 1.442695
        %v987 = vpow.pop %v986
        %v988 = vmul.f32 %v951, 1.442695
        %v989 = vpow.pop %v988
        %v990 = vmul.f32 %v952, 1.442695
        %v991 = vpow.pop %v990
        %v992 = vmul.f32 %v953, 1.442695
        %v993 = vpow.pop %v992
        %v994 = vmul.f32 %v954, 1.442695
        %v995 = vpow.pop %v994
        %v996 = vmul.f32 %v955, 1.442695
        %v997 = vpow.pop %v996
        %v998 = vmul.f32 %v956, 1.442695
        %v999 = vpow.pop %v998
        %v1000 = vmul.f32 %v957, 1.442695
        %v1001 = vpow.pop %v1000
        %v1002 = vmul.f32 %v958, 1.442695
        %v1003 = vpow.pop %v1002
        %v1004 = vmul.f32 %v959, 1.442695
        %v1005 = vpow.pop %v1004
        %v1006 = vmul.f32 %v960, 1.442695
        %v1007 = vpow.pop %v1006
        %v1008 = vmul.f32 %v961, 1.442695
        %v1009 = vpow.pop %v1008
        %v1010 = vmul.f32 %v962, 1.442695
        %v1011 = vpow.pop %v1010
        %v1012 = vmul.f32 %v963, 1.442695
        %v1013 = vpow.pop %v1012
        %v1014 = vmul.f32 %v964, 1.442695
        %v1015 = vpow.pop %v1014
        %v1016 = vmul.f32 %v965, 1.442695
        %v1017 = vpow.pop %v1016
        %v1018 = vmul.f32 %v966, 1.442695
        %v1019 = vpow.pop %v1018
        %v1020 = vmul.f32 %v967, 1.442695
        %v1021 = vpow.pop %v1020
        %v1022 = vmul.f32 %v968, 1.442695
        %v1023 = vpow.pop %v1022
        %v1024 = vmul.f32 %v969, 1.442695
        %v1025 = vpow.pop %v1024
        %v1026 = vmul.f32 %v970, 1.442695
        %v1027 = vpow.pop %v1026
        %v1028 = vmul.f32 %v971, 1.442695
        %v1029 = vpow.pop %v1028
        %v1030 = vmul.f32 %v972, 1.442695
        %v1031 = vpow.pop %v1030
        %v1032 = vmul.f32 %v973, 1.442695
        %v1033 = vpow.pop %v1032
        %v1034 = vmul.f32 %v974, 1.442695
        %v1035 = vpow.pop %v1034
        %v1036 = vmul.f32 %v975, 1.442695
        %v1037 = vpow.pop %v1036
        %v1038 = vmul.f32 %v976, 1.442695
        %v1039 = vpow.pop %v1038
        %v1040 = vmul.f32 %v977, 1.442695
        %v1041 = vpow.pop %v1040
        %v1042 = vadd.f32 %v979, %v981
        %1043 = vadd.xlane.f32.xlu0 %v1042
        %v1044 = vpop.xlane.xlu0 %1043
        %v1045 = vadd.f32 %v983, %v985
        %1046 = vadd.xlane.f32.xlu0 %v1045
        %v1047 = vpop.xlane.xlu0 %1046
        %v1048 = vadd.f32 %v987, %v989
        %1049 = vadd.xlane.f32.xlu0 %v1048
        %v1050 = vpop.xlane.xlu0 %1049
        %v1051 = vadd.f32 %v991, %v993
        %1052 = vadd.xlane.f32.xlu0 %v1051
        %v1053 = vpop.xlane.xlu0 %1052
        %v1054 = vadd.f32 %v995, %v997
        %1055 = vadd.xlane.f32.xlu0 %v1054
        %v1056 = vpop.xlane.xlu0 %1055
        %v1057 = vadd.f32 %v999, %v1001
        %1058 = vadd.xlane.f32.xlu0 %v1057
        %v1059 = vpop.xlane.xlu0 %1058
        %v1060 = vadd.f32 %v1003, %v1005
        %1061 = vadd.xlane.f32.xlu0 %v1060
        %v1062 = vpop.xlane.xlu0 %1061
        %v1063 = vadd.f32 %v1007, %v1009
        %1064 = vadd.xlane.f32.xlu0 %v1063
        %v1065 = vpop.xlane.xlu0 %1064
        %v1066 = vadd.f32 %v1011, %v1013
        %1067 = vadd.xlane.f32.xlu0 %v1066
        %v1068 = vpop.xlane.xlu0 %1067
        %v1069 = vadd.f32 %v1015, %v1017
        %1070 = vadd.xlane.f32.xlu0 %v1069
        %v1071 = vpop.xlane.xlu0 %1070
        %v1072 = vadd.f32 %v1019, %v1021
        %1073 = vadd.xlane.f32.xlu0 %v1072
        %v1074 = vpop.xlane.xlu0 %1073
        %v1075 = vadd.f32 %v1023, %v1025
        %1076 = vadd.xlane.f32.xlu0 %v1075
        %v1077 = vpop.xlane.xlu0 %1076
        %v1078 = vadd.f32 %v1027, %v1029
        %1079 = vadd.xlane.f32.xlu0 %v1078
        %v1080 = vpop.xlane.xlu0 %1079
        %v1081 = vadd.f32 %v1031, %v1033
        %1082 = vadd.xlane.f32.xlu0 %v1081
        %v1083 = vpop.xlane.xlu0 %1082
        %v1084 = vadd.f32 %v1035, %v1037
        %1085 = vadd.xlane.f32.xlu0 %v1084
        %v1086 = vpop.xlane.xlu0 %1085
        %v1087 = vadd.f32 %v1039, %v1041
        %1088 = vadd.xlane.f32.xlu0 %v1087
        %v1089 = vpop.xlane.xlu0 %1088
        %v1090 = vrcp.pop %v1044
        %v1091 = vrcp.pop %v1047
        %v1092 = vrcp.pop %v1050
        %v1093 = vrcp.pop %v1053
        %v1094 = vrcp.pop %v1056
        %v1095 = vrcp.pop %v1059
        %v1096 = vrcp.pop %v1062
        %v1097 = vrcp.pop %v1065
        %v1098 = vrcp.pop %v1068
        %v1099 = vrcp.pop %v1071
        %v1100 = vrcp.pop %v1074
        %v1101 = vrcp.pop %v1077
        %v1102 = vrcp.pop %v1080
        %v1103 = vrcp.pop %v1083
        %v1104 = vrcp.pop %v1086
        %v1105 = vrcp.pop %v1089
        %v1106 = vmul.f32 %v979, %v1090
        %v1107 = vmul.f32 %v981, %v1090
        %v1108 = vmul.f32 %v983, %v1091
        %v1109 = vmul.f32 %v985, %v1091
        %v1110 = vmul.f32 %v987, %v1092
        %v1111 = vmul.f32 %v989, %v1092
        %v1112 = vmul.f32 %v991, %v1093
        %v1113 = vmul.f32 %v993, %v1093
        %v1114 = vmul.f32 %v995, %v1094
        %v1115 = vmul.f32 %v997, %v1094
        %v1116 = vmul.f32 %v999, %v1095
        %v1117 = vmul.f32 %v1001, %v1095
        %v1118 = vmul.f32 %v1003, %v1096
        %v1119 = vmul.f32 %v1005, %v1096
        %v1120 = vmul.f32 %v1007, %v1097
        %v1121 = vmul.f32 %v1009, %v1097
        %v1122 = vmul.f32 %v1011, %v1098
        %v1123 = vmul.f32 %v1013, %v1098
        %v1124 = vmul.f32 %v1015, %v1099
        %v1125 = vmul.f32 %v1017, %v1099
        %v1126 = vmul.f32 %v1019, %v1100
        %v1127 = vmul.f32 %v1021, %v1100
        %v1128 = vmul.f32 %v1023, %v1101
        %v1129 = vmul.f32 %v1025, %v1101
        %v1130 = vmul.f32 %v1027, %v1102
        %v1131 = vmul.f32 %v1029, %v1102
        %v1132 = vmul.f32 %v1031, %v1103
        %v1133 = vmul.f32 %v1033, %v1103
        %v1134 = vmul.f32 %v1035, %v1104
        %v1135 = vmul.f32 %v1037, %v1104
        %v1136 = vmul.f32 %v1039, %v1105
        %v1137 = vmul.f32 %v1041, %v1105
        %1138 = vmatprep.subr.mxu0 %v1107
        %1139 = vmatpush1.xpose.msra.mxu0 %v1106
        %1140 = vmatprep.subr.mxu0 %v1109
        %1141 = vmatpush1.xpose.msra.mxu0 %v1108
        %1142 = vmatprep.subr.mxu0 %v1111
        %1143 = vmatpush1.xpose.msra.mxu0 %v1110
        %1144 = vmatprep.subr.mxu0 %v1113
        %1145 = vmatpush1.xpose.msra.mxu0 %v1112
        %1146 = vmatprep.subr.mxu0 %v1115
        %1147 = vmatpush1.xpose.msra.mxu0 %v1114
        %1148 = vmatprep.subr.mxu0 %v1117
        %1149 = vmatpush1.xpose.msra.mxu0 %v1116
        %1150 = vmatprep.subr.mxu0 %v1119
        %1151 = vmatpush1.xpose.msra.mxu0 %v1118
        %1152 = vmatprep.subr.mxu0 %v1121
        %1153 = vmatpush1.xpose.msra.mxu0 %v1120
        %1154 = vmatprep.subr.mxu0 %v1123
        %1155 = vmatpush1.xpose.msra.mxu0 %v1122
        %1156 = vmatprep.subr.mxu0 %v1125
        %1157 = vmatpush1.xpose.msra.mxu0 %v1124
        %1158 = vmatprep.subr.mxu0 %v1127
        %1159 = vmatpush1.xpose.msra.mxu0 %v1126
        %1160 = vmatprep.subr.mxu0 %v1129
        %1161 = vmatpush1.xpose.msra.mxu0 %v1128
        %1162 = vmatprep.subr.mxu0 %v1131
        %1163 = vmatpush1.xpose.msra.mxu0 %v1130
        %1164 = vmatprep.subr.mxu0 %v1133
        %1165 = vmatpush1.xpose.msra.mxu0 %v1132
        %1166 = vmatprep.subr.mxu0 %v1135
        %1167 = vmatpush1.xpose.msra.mxu0 %v1134
        %1168 = vmatprep.subr.mxu0 %v1137
        %1169 = vmatpush1.xpose.msra.mxu0 %v1136
        %1170 = vmatprep.subr.mxu0 0.0
        %1171 = vmatpush1.xpose.msra.mxu0 0.0
        %1172 = vmatprep.subr.mxu0 0.0
        %1173 = vmatpush1.xpose.msra.mxu0 0.0
        %1174 = vmatprep.subr.mxu0 0.0
        %1175 = vmatpush1.xpose.msra.mxu0 0.0
        %1176 = vmatprep.subr.mxu0 0.0
        %1177 = vmatpush1.xpose.msra.mxu0 0.0
        %1178 = vmatprep.subr.mxu0 0.0
        %1179 = vmatpush1.xpose.msra.mxu0 0.0
        %1180 = vmatprep.subr.mxu0 0.0
        %1181 = vmatpush1.xpose.msra.mxu0 0.0
        %1182 = vmatprep.subr.mxu0 0.0
        %1183 = vmatpush1.xpose.msra.mxu0 0.0
        %1184 = vmatprep.subr.mxu0 0.0
        %1185 = vmatpush1.xpose.msra.mxu0 0.0
        %1186 = vmatprep.subr.mxu0 0.0
        %1187 = vmatpush1.xpose.msra.mxu0 0.0
        %1188 = vmatprep.subr.mxu0 0.0
        %1189 = vmatpush1.xpose.msra.mxu0 0.0
        %1190 = vmatprep.subr.mxu0 0.0
        %1191 = vmatpush1.xpose.msra.mxu0 0.0
        %1192 = vmatprep.subr.mxu0 0.0
        %1193 = vmatpush1.xpose.msra.mxu0 0.0
        %1194 = vmatprep.subr.mxu0 0.0
        %1195 = vmatpush1.xpose.msra.mxu0 0.0
        %1196 = vmatprep.subr.mxu0 0.0
        %1197 = vmatpush1.xpose.msra.mxu0 0.0
        %1198 = vmatprep.subr.mxu0 0.0
        %1199 = vmatpush1.xpose.msra.mxu0 0.0
        %1200 = vmatprep.subr.mxu0 0.0
        %1201 = vmatpush1.xpose.msra.mxu0 0.0
        %1202 = vmatprep.mubr.f32.mxu0 %v543
        %1203 = vmatmul.mubr.f32.gmra.mrb[0].mxu0 %v541
        %v1204 = vpop.f32.mrb[0].mxu0
        %v1205 = vadd.f32 0.0, %v1204
        %v1206 = vpop.f32.mrb[0].mxu0
        %1207 = vmatprep.mubr.f32.mxu0 %v549
        %1208 = vmatmul.mubr.f32.gmra.mrb[0].mxu0 %v547
        %v1209 = vpop.f32.mrb[0].mxu0
        %v1210 = vadd.f32 0.0, %v1209
        %v1211 = vpop.f32.mrb[0].mxu0
        %1212 = vmatprep.mubr.f32.mxu0 %v555
        %1213 = vmatmul.mubr.f32.gmra.mrb[0].mxu0 %v553
        %v1214 = vpop.f32.mrb[0].mxu0
        %v1215 = vadd.f32 0.0, %v1214
        %v1216 = vpop.f32.mrb[0].mxu0
        %1217 = vmatprep.mubr.f32.mxu0 %v561
        %1218 = vmatmul.mubr.f32.gmra.mrb[0].mxu0 %v559
        %v1219 = vpop.f32.mrb[0].mxu0
        %v1220 = vadd.f32 0.0, %v1219
        %v1221 = vpop.f32.mrb[0].mxu0
        %1222 = vdwg.mxu0
        %s1223 = sld [smem:[#allocation2]]
        %v1224 = vstv %s1223
        %v1225 = vmul.f32 %v1224, %v1205
        %v1226 = vmul.f32 %v1224, %v1210
        %v1227 = vmul.f32 %v1224, %v1215
        %v1228 = vmul.f32 %v1224, %v1220
        %v1229 = vadd.f32 %v1225, %v419
        %v1230 = vadd.f32 %v1226, %v420
        %v1231 = vadd.f32 %v1227, %v421
        %v1232 = vadd.f32 %v1228, %v422
        %1233 = vst [vmem:[%s382] sm:$0xff] %v1229
        %1234 = vst [vmem:[%s382 + $0x8] sm:$0xff] %v1230
        %1235 = vst [vmem:[%s382 + $0x10] sm:$0xff] %v1231
        %1236 = vst [vmem:[%s382 + $0x18] sm:$0xff] %v1232
        %1237 = vst [vmem:[%s409] sm:$0xff] %v1106
        %1238 = vst [vmem:[%s409 + $0x8] sm:$0xff] %v1107
        %1239 = vst [vmem:[%s409 + $0x10] sm:$0xff] %v1108
        %1240 = vst [vmem:[%s409 + $0x18] sm:$0xff] %v1109
        %1241 = vst [vmem:[%s409 + $0x20] sm:$0xff] %v1110
        %1242 = vst [vmem:[%s409 + $0x28] sm:$0xff] %v1111
        %1243 = vst [vmem:[%s409 + $0x30] sm:$0xff] %v1112
        %1244 = vst [vmem:[%s409 + $0x38] sm:$0xff] %v1113
        %1245 = vst [vmem:[%s409 + $0x40] sm:$0xff] %v1114
        %1246 = vst [vmem:[%s409 + $0x48] sm:$0xff] %v1115
        %1247 = vst [vmem:[%s409 + $0x50] sm:$0xff] %v1116
        %1248 = vst [vmem:[%s409 + $0x58] sm:$0xff] %v1117
        %1249 = vst [vmem:[%s409 + $0x60] sm:$0xff] %v1118
        %1250 = vst [vmem:[%s409 + $0x68] sm:$0xff] %v1119
        %1251 = vst [vmem:[%s409 + $0x70] sm:$0xff] %v1120
        %1252 = vst [vmem:[%s409 + $0x78] sm:$0xff] %v1121
        %1253 = vst [vmem:[%s409 + $0x80] sm:$0xff] %v1122
        %1254 = vst [vmem:[%s409 + $0x88] sm:$0xff] %v1123
        %1255 = vst [vmem:[%s409 + $0x90] sm:$0xff] %v1124
        %1256 = vst [vmem:[%s409 + $0x98] sm:$0xff] %v1125
        %1257 = vst [vmem:[%s409 + $0xa0] sm:$0xff] %v1126
        %1258 = vst [vmem:[%s409 + $0xa8] sm:$0xff] %v1127
        %1259 = vst [vmem:[%s409 + $0xb0] sm:$0xff] %v1128
        %1260 = vst [vmem:[%s409 + $0xb8] sm:$0xff] %v1129
        %1261 = vst [vmem:[%s409 + $0xc0] sm:$0xff] %v1130
        %1262 = vst [vmem:[%s409 + $0xc8] sm:$0xff] %v1131
        %1263 = vst [vmem:[%s409 + $0xd0] sm:$0xff] %v1132
        %1264 = vst [vmem:[%s409 + $0xd8] sm:$0xff] %v1133
        %1265 = vst [vmem:[%s409 + $0xe0] sm:$0xff] %v1134
        %1266 = vst [vmem:[%s409 + $0xe8] sm:$0xff] %v1135
        %1267 = vst [vmem:[%s409 + $0xf0] sm:$0xff] %v1136
        %1268 = vst [vmem:[%s409 + $0xf8] sm:$0xff] %v1137
        %s1269 = sand.u32 %s202, 1
        %s1270 = sand.u32 %s202, 1
        %s1271 = smul.addr %s1270, 32
        %s1272 = scalar_lea.vmem [#allocation4], %s1271
        %s1273 = smul.u32 16, %s26
        %p1274 = scmp.lt.s32.totalorder %s25, 1
        %s1275 = scalar_select %p1274, %s25, 1
        %p1276 = scmp.lt.s32.totalorder %s1273, 31
        %s1277 = scalar_select %p1276, %s1273, 31
        %s1278 = smul.addr %s1277, 2
        %s1279 = smul.addr %s1275, 64
        %s1280 = sadd.s32 %s1278, %s1279
        %s1281 = smul.addr %s1280, 8
        %s1282 = scalar_lea.vmem %s8, %s1281
        // Predicated region
        $region87: #{self_attention_pallas.1} parent=81 // pred_check
          %p1283 = pneg %p212
        $region88: #{self_attention_pallas.1} parent=81 // pred_check_branch
          %1285 = sbr.rel (%p1283) target = $region90
        $region89: #{self_attention_pallas.1} parent=81 // pred_region
          %s1286 = smul.addr %s25, 8
          %s1287 = sadd.s32 %s26, %s1286
          %s1288 = smul.addr %s1287, 8
          %s1289 = scalar_lea.vmem %s7, %s1288
          // Predicated region
          $region91: #{self_attention_pallas.1} parent=89 // pred_check
            _
          $region92: #{self_attention_pallas.1} parent=89 // pred_check_branch
            %1291 = sbr.rel (0) target = $region94
          $region93: #{self_attention_pallas.1} parent=89 // pred_region
            // Predicated region
            $region95: #{self_attention_pallas.1} parent=93 // pred_check
              _
            $region96: #{self_attention_pallas.1} parent=93 // pred_check_branch
              %1293 = sbr.rel (0) target = $region98
            $region97: #{self_attention_pallas.1} parent=93 // pred_region
              // Predicated region
              $region110: #{self_attention_pallas.1} parent=97 // pred_check
                _
              $region111: #{self_attention_pallas.1} parent=97 // pred_check_branch
                %1314 = sbr.rel (0) target = $region113
              $region112: #{self_attention_pallas.1} parent=97 // pred_region
                loop: start=0, step=1, limit=1
                $region114: #{self_attention_pallas.1} parent=112 // loop_pre_header
                  _
                $region115: #{self_attention_pallas.1} parent=112 // loop_header
                  %s1316 = sphi 0, %s1320
                  %p1317 = scmp.ge.s32.totalorder %s1316, 1
                  %s1321 = sphi %s1272, %s1272
                  %s1322 = sphi %s1289, %s1289
                $region116: #{self_attention_pallas.1} parent=112 // loop_header_branch
                  %1319 = sbr.rel (%p1317) target = $region120
                $region117: #{self_attention_pallas.1} parent=112 // loop_body
                  %v1323 = vld [vmem:[%s1321] sm:$0xff]
                  %1324 = vst [vmem:[%s1322] sm:$0xff] %v1323
                  %v1325 = vld [vmem:[%s1321 + $0x8] sm:$0xff]
                  %1326 = vst [vmem:[%s1322 + $0x10] sm:$0xff] %v1325
                  %v1327 = vld [vmem:[%s1321 + $0x10] sm:$0xff]
                  %1328 = vst [vmem:[%s1322 + $0x20] sm:$0xff] %v1327
                  %v1329 = vld [vmem:[%s1321 + $0x18] sm:$0xff]
                  %1330 = vst [vmem:[%s1322 + $0x30] sm:$0xff] %v1329
                $region118: #{self_attention_pallas.1} parent=112 // loop_footer
                  %s1320 = sadd.s32 1, %s1316
                $region119: #{self_attention_pallas.1} parent=112 // loop_footer_branch
                  %1315 = sbr.rel target = $region115
                $region120: #{self_attention_pallas.1} parent=112 // loop_exit
                  _
              $region113: #{self_attention_pallas.1} parent=97 // pred_fallthru
                _
              // Predicated region
              $region121: #{self_attention_pallas.1} parent=97 // pred_check
                _
              $region122: #{self_attention_pallas.1} parent=97 // pred_check_branch
                %1332 = sbr.rel target = $region124
              $region123: #{self_attention_pallas.1} parent=97 // pred_region
                _
              $region124: #{self_attention_pallas.1} parent=97 // pred_fallthru
                _
            $region98: #{self_attention_pallas.1} parent=93 // pred_fallthru
              _
            // Predicated region
            $region99: #{self_attention_pallas.1} parent=93 // pred_check
              _
            $region100: #{self_attention_pallas.1} parent=93 // pred_check_branch
              %1295 = sbr.rel target = $region102
            $region101: #{self_attention_pallas.1} parent=93 // pred_region
              loop: start=0, step=1, limit=1
              $region103: #{self_attention_pallas.1} parent=101 // loop_pre_header
                _
              $region104: #{self_attention_pallas.1} parent=101 // loop_header
                %s1298 = sphi 0, %s1302
                %p1299 = scmp.ge.s32.totalorder %s1298, 1
                %s1303 = sphi %s1272, %s1272
                %s1304 = sphi %s1289, %s1289
              $region105: #{self_attention_pallas.1} parent=101 // loop_header_branch
                %1301 = sbr.rel (%p1299) target = $region109
              $region106: #{self_attention_pallas.1} parent=101 // loop_body
                %v1305 = vld [vmem:[%s1303] sm:$0xff]
                %1306 = vst [vmem:[%s1304] sm:$0xff] %v1305
                %v1307 = vld [vmem:[%s1303 + $0x8] sm:$0xff]
                %1308 = vst [vmem:[%s1304 + $0x10] sm:$0xff] %v1307
                %v1309 = vld [vmem:[%s1303 + $0x10] sm:$0xff]
                %1310 = vst [vmem:[%s1304 + $0x20] sm:$0xff] %v1309
                %v1311 = vld [vmem:[%s1303 + $0x18] sm:$0xff]
                %1312 = vst [vmem:[%s1304 + $0x30] sm:$0xff] %v1311
              $region107: #{self_attention_pallas.1} parent=101 // loop_footer
                %s1302 = sadd.s32 1, %s1298
              $region108: #{self_attention_pallas.1} parent=101 // loop_footer_branch
                %1297 = sbr.rel target = $region104
              $region109: #{self_attention_pallas.1} parent=101 // loop_exit
                _
            $region102: #{self_attention_pallas.1} parent=93 // pred_fallthru
              _
          $region94: #{self_attention_pallas.1} parent=89 // pred_fallthru
            _
          %1333 = vnop
        $region90: #{self_attention_pallas.1} parent=81 // pred_fallthru
          _
        // Predicated region
        $region125: #{self_attention_pallas.1} parent=81 // pred_check
          %p1334 = pneg %p240
        $region126: #{self_attention_pallas.1} parent=81 // pred_check_branch
          %1336 = sbr.rel (%p1334) target = $region128
        $region127: #{self_attention_pallas.1} parent=81 // pred_region
          %s1337 = smul.u32 16, %s26
        $region128: #{self_attention_pallas.1} parent=81 // pred_fallthru
          _
      $region82: #{self_attention_pallas.1} parent=5 // pred_fallthru
        _
      %p1338 = scmp.le.s32.totalorder 2, %s16
      // Predicated region
      $region129: #{self_attention_pallas.1} parent=5 // pred_check
        %p1339 = pneg %p1338
      $region130: #{self_attention_pallas.1} parent=5 // pred_check_branch
        %1341 = sbr.rel (%p1339) target = $region132
      $region131: #{self_attention_pallas.1} parent=5 // pred_region
        %s1342 = ssub.s32 %s16, 2
        // Predicated region
        $region133: #{self_attention_pallas.1} parent=131 // pred_check
          %p1343 = pneg %p218
        $region134: #{self_attention_pallas.1} parent=131 // pred_check_branch
          %1345 = sbr.rel (%p1343) target = $region136
        $region135: #{self_attention_pallas.1} parent=131 // pred_region
          %s1346 = sand.u32 %s203, 1
          %s1347 = sand.u32 %s203, 1
          %s1348 = smul.addr %s1347, 32
          %s1349 = scalar_lea.vmem [#allocation4], %s1348
        $region136: #{self_attention_pallas.1} parent=131 // pred_fallthru
          _
        // Predicated region
        $region137: #{self_attention_pallas.1} parent=131 // pred_check
          %p1350 = pneg %p246
        $region138: #{self_attention_pallas.1} parent=131 // pred_check_branch
          %1352 = sbr.rel (%p1350) target = $region140
        $region139: #{self_attention_pallas.1} parent=131 // pred_region
          %s1353 = smul.u32 16, %s28
          %p1354 = scmp.lt.s32.totalorder %s27, 1
          %s1355 = scalar_select %p1354, %s27, 1
          %p1356 = scmp.lt.s32.totalorder %s1353, 31
          %s1357 = scalar_select %p1356, %s1353, 31
          %s1358 = smul.addr %s1357, 2
          %s1359 = smul.addr %s1355, 64
          %s1360 = sadd.s32 %s1358, %s1359
          %s1361 = smul.addr %s1360, 8
          %s1362 = scalar_lea.vmem %s8, %s1361
        $region140: #{self_attention_pallas.1} parent=131 // pred_fallthru
          _
      $region132: #{self_attention_pallas.1} parent=5 // pred_fallthru
        _
    $region6: #{self_attention_pallas.1} parent=1 // loop_footer
      %s20 = sadd.s32 1, %s16
    $region7: #{self_attention_pallas.1} parent=1 // loop_footer_branch
      %15 = sbr.rel target = $region3
    $region8: #{self_attention_pallas.1} parent=1 // loop_exit
      _

</llo_original>
